<compile_context>
chip_gen: v7x
topology: tpu7x:2x2x1
jax: 0.10.0
libtpu: 0.0.40
codegen_flags: <defaults>
</compile_context>

<pallas_src>
import functools
import math

import numpy as np
import jax
import jax.numpy as jnp
from jax.experimental import pallas as pl
from jax.experimental.pallas import tpu as pltpu

# ----- model hyper-parameters (small, consistent with the module structure) -----
D_MODEL = 32
D_K = 8
D_V = 8
H = 4
D_FF = 64
EPS = 1e-5                       # nn.LayerNorm default

HDK = H * D_K                    # 32
HDV = H * D_V                    # 32
QKV_COLS = HDK + HDK + HDV       # 96

# ----- packed-parameter layout ----------------------------------------------------
# w_in  : (D_MODEL, 256) = [ wq|wk|wv (96 cols @ 0) | pad | wf1 (64 cols @ 128) | pad ]
#         both live blocks start on 128-lane boundaries -> zero-cost slices.
# w_out : (HDV + D_FF, D_MODEL) = (96, 32)   [ wo ; wf2 ]
# vecs  : (12, D_FF) = (12, 64)              one bias / LayerNorm vector per row (f32)
W_IN_COLS = 256
COL_QKV = 0
COL_WF1 = 128
(ROW_BQ, ROW_BK, ROW_BV, ROW_BO, ROW_BF1, ROW_BF2,
 ROW_G1, ROW_BE1, ROW_G2, ROW_BE2, ROW_G3, ROW_BE3) = range(12)


def _layer_norm(x, gamma, beta):
    mean = jnp.mean(x, axis=-1, keepdims=True)
    var = jnp.mean((x - mean) ** 2, axis=-1, keepdims=True)
    return (x - mean) * jax.lax.rsqrt(var + EPS) * gamma + beta


def _attention_ffn(xq, q, k, v, w_in, w_out, vecs, bt, n, d, cdt):
    """Shared tail: attention core, Wo projection, residual LayerNorms, FFN, widening.

    xq/q/k/v are f32 (rows, .) activations; w_in/w_out are in `cdt`; vecs is f32.
    Returns the (bt, 1, n*d) lane-dense output block (f32).
    """
    rows = bt * n
    wo = w_out[0:HDV, :]
    wf2 = w_out[HDV:HDV + D_FF, :]
    wf1 = w_in[:, COL_WF1:COL_WF1 + D_FF]

    def vrow(r, width):
        return vecs[r:r + 1, 0:width]                 # (1, width), broadcasts over rows

    bo, bf1, bf2 = vrow(ROW_BO, D_MODEL), vrow(ROW_BF1, D_FF), vrow(ROW_BF2, D_MODEL)
    g1, be1 = vrow(ROW_G1, D_MODEL), vrow(ROW_BE1, D_MODEL)
    g2, be2 = vrow(ROW_G2, D_MODEL), vrow(ROW_BE2, D_MODEL)
    g3, be3 = vrow(ROW_G3, D_MODEL), vrow(ROW_BE3, D_MODEL)

    # ---- head-batched scaled dot-product attention --------------------------------
    # Heads stacked onto the leading batch dim: two 3-D einsums + one softmax for all
    # heads, instead of H separate tiny matmuls / softmaxes.
    q3 = q.reshape(bt, n, HDK)
    k3 = k.reshape(bt, n, HDK)
    v3 = v.reshape(bt, n, HDV)
    qg = jnp.concatenate([q3[:, :, h * D_K:(h + 1) * D_K] for h in range(H)], axis=0).astype(cdt)
    kg = jnp.concatenate([k3[:, :, h * D_K:(h + 1) * D_K] for h in range(H)], axis=0).astype(cdt)
    vg = jnp.concatenate([v3[:, :, h * D_V:(h + 1) * D_V] for h in range(H)], axis=0).astype(cdt)

    s = jnp.einsum('gnd,gmd->gnm', qg, kg,
                   preferred_element_type=jnp.float32) * (1.0 / math.sqrt(D_K))
    # TODO(synk): attention_mask / attention_weights (optional, default None) not supported.
    s = s - jnp.max(s, axis=-1, keepdims=True)
    p = jnp.exp(s)
    p = p / jnp.sum(p, axis=-1, keepdims=True)        # exact normalization, f32
    # TODO(synk): attention dropout is stochastic; identity here (eval / inference mode).
    og = jnp.einsum('gnm,gmd->gnd', p.astype(cdt), vg,
                    preferred_element_type=jnp.float32)          # (H*bt, n, D_V)
    attn = jnp.concatenate([og[h * bt:(h + 1) * bt] for h in range(H)],
                           axis=-1).reshape(rows, HDV)           # back to (rows, H*D_V)
    attn = jnp.dot(attn.astype(cdt), wo, preferred_element_type=jnp.float32) + bo

    # ---- residual LayerNorms + position-wise FFN (dropouts = identity) -------------
    t1 = _layer_norm(xq + attn, g1, be1)              # MultiHeadAttention: LN(q + attn)
    t2 = _layer_norm(xq + t1, g2, be2)                # EncoderLayer: lnorm(q + mha_out)
    hdn = jnp.maximum(
        jnp.dot(t2.astype(cdt), wf1, preferred_element_type=jnp.float32) + bf1, 0.0)
    ffo = jnp.dot(hdn.astype(cdt), wf2, preferred_element_type=jnp.float32) + bf2
    out = _layer_norm(t2 + ffo, g3, be3)              # (rows, D_MODEL)

    # ---- lane-dense widening: (rows, 32) -> (bt, 1, n*32) ---------------------------
    # Built from sublane slices + lane concat (known-good op classes) so the final store
    # and output DMA are >= 128 lanes wide instead of a masked 32-lane store.
    out3 = out.reshape(bt, n, d)                      # free major-dim split
    return jnp.concatenate([out3[:, i:i + 1, :] for i in range(n)], axis=-1)


def encoder_layer_self_kernel(x_ref, w_in_ref, w_out_ref, vecs_ref, out_ref, *, cdt):
    """Self-attention fast path: queries == keys == values, fused QKV projection."""
    bt, n, d = x_ref.shape
    rows = bt * n
    x = x_ref[...].astype(jnp.float32).reshape(rows, d)   # free major-dim collapse
    w_in = w_in_ref[...]
    vecs = vecs_ref[...]

    # One (rows,32)@(32,96) matmul for Q,K,V together (wider MXU push, single input DMA).
    qkv = jnp.dot(x.astype(cdt), w_in[:, COL_QKV:COL_QKV + QKV_COLS],
                  preferred_element_type=jnp.float32)
    q = qkv[:, 0:HDK] + vecs[ROW_BQ:ROW_BQ + 1, 0:HDK]
    k = qkv[:, HDK:2 * HDK] + vecs[ROW_BK:ROW_BK + 1, 0:HDK]
    v = qkv[:, 2 * HDK:2 * HDK + HDV] + vecs[ROW_BV:ROW_BV + 1, 0:HDV]

    out_ref[...] = _attention_ffn(x, q, k, v, w_in, w_out_ref[...], vecs,
                                  bt, n, d, cdt).astype(out_ref.dtype)


def encoder_layer_cross_kernel(q_ref, k_ref, v_ref, w_in_ref, w_out_ref, vecs_ref,
                               out_ref, *, cdt):
    """General path: distinct queries / keys / values (3 data blocks per grid step)."""
    bt, n, d = q_ref.shape
    rows = bt * n
    xq = q_ref[...].astype(jnp.float32).reshape(rows, d)
    xk = k_ref[...].astype(jnp.float32).reshape(rows, d)
    xv = v_ref[...].astype(jnp.float32).reshape(rows, d)
    w_in = w_in_ref[...]
    vecs = vecs_ref[...]

    # wk / wv start lane-offset inside the qkv block; acceptable on this (rarer) path.
    wq = w_in[:, COL_QKV:COL_QKV + HDK]
    wk = w_in[:, COL_QKV + HDK:COL_QKV + 2 * HDK]
    wv = w_in[:, COL_QKV + 2 * HDK:COL_QKV + 2 * HDK + HDV]
    q = jnp.dot(xq.astype(cdt), wq, preferred_element_type=jnp.float32) \
        + vecs[ROW_BQ:ROW_BQ + 1, 0:HDK]
    k = jnp.dot(xk.astype(cdt), wk, preferred_element_type=jnp.float32) \
        + vecs[ROW_BK:ROW_BK + 1, 0:HDK]
    v = jnp.dot(xv.astype(cdt), wv, preferred_element_type=jnp.float32) \
        + vecs[ROW_BV:ROW_BV + 1, 0:HDV]

    out_ref[...] = _attention_ffn(xq, q, k, v, w_in, w_out_ref[...], vecs,
                                  bt, n, d, cdt).astype(out_ref.dtype)


# ----------------------------- parameter packing -----------------------------
def pack_params(p):
    (wq, bq, wk, bk, wv, bv, wo, bo,
     g1, be1, g2, be2, wf1, bf1, wf2, bf2, g3, be3) = p
    qkv = jnp.concatenate([wq, wk, wv], axis=1)               # (32, 96)
    w_in = jnp.zeros((D_MODEL, W_IN_COLS), jnp.float32)
    w_in = w_in.at[:, COL_QKV:COL_QKV + QKV_COLS].set(qkv)
    w_in = w_in.at[:, COL_WF1:COL_WF1 + D_FF].set(wf1)        # (32, 256)
    w_out = jnp.concatenate([wo, wf2], axis=0)                # (96, 32)

    def row(vec):
        vec = jnp.reshape(vec, (-1,))
        return jnp.pad(vec, (0, D_FF - vec.shape[0]))[None, :]

    vecs = jnp.concatenate(
        [row(bq), row(bk), row(bv), row(bo), row(bf1), row(bf2),
         row(g1), row(be1), row(g2), row(be2), row(g3), row(be3)], axis=0)  # (12, 64)
    return w_in, w_out, vecs


# ----------------------------- wrapper -----------------------------
def encoder_layer(queries, keys, values, packed_params, *,
                  target_rows=1024, compute_dtype=jnp.bfloat16, vmem_limit_bytes=None):
    """EncoderLayer forward via Pallas.

    compute_dtype : MXU operand dtype (bf16 default; jnp.float32 for ~1e-4 parity).
    Tuning guidance (per generation):
      * v5e / v6e (128 MiB VMEM, 1 TC): target_rows 2048-4096 + vmem_limit_bytes≈96<<20.
      * v7x (64 MiB VMEM, 2 TCs): keep target_rows <= ~2048; the bpt cap below keeps the
        "parallel" grid at >= 2 steps so both cores get work.
      VMEM budget note: with D_MODEL=32 / D_K=8 every (.,32)/(.,8)-wide intermediate is
      lane-padded to 128 lanes, so each live (rows, .) value costs ~rows*128*4 bytes.
    """
    B, N, D = queries.shape
    assert D == D_MODEL
    # TODO(synk): nq != nk cross-attention lengths are not supported by this kernel.
    assert keys.shape == queries.shape and values.shape == queries.shape
    w_in, w_out, vecs = packed_params
    w_in = w_in.astype(compute_dtype)      # bf16 weight slabs -> half the weight DMA bytes
    w_out = w_out.astype(compute_dtype)

    # Largest divisor of B whose row tile fits target_rows, capped at B//2 so the
    # 1-D "parallel" grid has >= 2 steps (v7x megacore); extra steps cost ~0.35 us each.
    cap = max(1, B // 2)
    bpt = 1
    for cand in range(1, B + 1):
        if B % cand == 0 and cand <= cap and cand * N <= max(target_rows, N):
            bpt = cand
    grid = (B // bpt,)

    data_spec = pl.BlockSpec((bpt, N, D), lambda t: (t, 0, 0))
    # Lane-dense output: result is produced as a (B, 1, N*D) slab so each out block's
    # minor dim is N*D (256 at N=8) instead of 32 -> unmasked vst / wide output DMA.
    out_spec = pl.BlockSpec((bpt, 1, N * D), lambda t: (t, 0, 0))
    out_shape = jax.ShapeDtypeStruct((B, 1, N * D), queries.dtype)

    def full_spec(arr):
        nd = arr.ndim
        return pl.BlockSpec(arr.shape, lambda t, _nd=nd: (0,) * _nd)

    compiler_params = pltpu.CompilerParams(
        dimension_semantics=("parallel",), vmem_limit_bytes=vmem_limit_bytes)

    self_attention = (keys is queries) and (values is queries)
    if self_attention:
        out = pl.pallas_call(
            functools.partial(encoder_layer_self_kernel, cdt=compute_dtype),
            out_shape=out_shape, grid=grid,
            in_specs=[data_spec, full_spec(w_in), full_spec(w_out), full_spec(vecs)],
            out_specs=out_spec, compiler_params=compiler_params,
        )(queries, w_in, w_out, vecs)
    else:
        out = pl.pallas_call(
            functools.partial(encoder_layer_cross_kernel, cdt=compute_dtype),
            out_shape=out_shape, grid=grid,
            in_specs=[data_spec, data_spec, data_spec,
                      full_spec(w_in), full_spec(w_out), full_spec(vecs)],
            out_specs=out_spec, compiler_params=compiler_params,
        )(queries, keys, values, w_in, w_out, vecs)
    return out.reshape(B, N, D)


# ----------------------------- deterministic parameter init -----------------------------
def xavier_uniform(key, shape):
    fan_in, fan_out = shape
    limit = np.sqrt(6.0 / (fan_in + fan_out))
    return jax.random.uniform(key, shape, jnp.float32, -limit, limit)


def make_params(key):
    ks = jax.random.split(key, 8)
    wq = xavier_uniform(ks[0], (D_MODEL, HDK)); bq = jnp.zeros((1, HDK), jnp.float32)
    wk = xavier_uniform(ks[1], (D_MODEL, HDK)); bk = jnp.zeros((1, HDK), jnp.float32)
    wv = xavier_uniform(ks[2], (D_MODEL, HDV)); bv = jnp.zeros((1, HDV), jnp.float32)
    wo = xavier_uniform(ks[3], (HDV, D_MODEL)); bo = jnp.zeros((1, D_MODEL), jnp.float32)
    g1 = jnp.ones((1, D_MODEL), jnp.float32); be1 = jnp.zeros((1, D_MODEL), jnp.float32)
    g2 = jnp.ones((1, D_MODEL), jnp.float32); be2 = jnp.zeros((1, D_MODEL), jnp.float32)
    wf1 = xavier_uniform(ks[4], (D_MODEL, D_FF)); bf1 = jnp.zeros((1, D_FF), jnp.float32)
    wf2 = xavier_uniform(ks[5], (D_FF, D_MODEL)); bf2 = jnp.zeros((1, D_MODEL), jnp.float32)
    g3 = jnp.ones((1, D_MODEL), jnp.float32); be3 = jnp.zeros((1, D_MODEL), jnp.float32)
    return [wq, bq, wk, bk, wv, bv, wo, bo,
            g1, be1, g2, be2,
            wf1, bf1, wf2, bf2, g3, be3]


# ----------------------------- plain-JAX reference (for sanity) -----------------------------
def reference(queries, keys, values, p):
    (wq, bq, wk, bk, wv, bv, wo, bo,
     g1, be1, g2, be2, wf1, bf1, wf2, bf2, g3, be3) = p
    B, N, D = queries.shape

    def ln(x, g, b):
        m = jnp.mean(x, -1, keepdims=True)
        v = jnp.mean((x - m) ** 2, -1, keepdims=True)
        return (x - m) / jnp.sqrt(v + EPS) * g + b

    q = (queries @ wq + bq).reshape(B, N, H, D_K).transpose(0, 2, 1, 3)
    k = (keys @ wk + bk).reshape(B, N, H, D_K).transpose(0, 2, 3, 1)
    v = (values @ wv + bv).reshape(B, N, H, D_V).transpose(0, 2, 1, 3)
    att = jnp.matmul(q, k) / np.sqrt(D_K)
    att = jax.nn.softmax(att, -1)
    out = jnp.matmul(att, v).transpose(0, 2, 1, 3).reshape(B, N, HDV)
    out = out @ wo + bo
    t1 = ln(queries + out, g1, be1)
    t2 = ln(queries + t1, g2, be2)
    ff = jnp.maximum(t2 @ wf1 + bf1, 0.0) @ wf2 + bf2
    return ln(t2 + ff, g3, be3)


if __name__ == "__main__":
    key = jax.random.PRNGKey(0)
    kx, kq, kk, kv, kp = jax.random.split(key, 5)

    B, N = 2, 8
    params = make_params(kp)
    packed = pack_params(params)

    # --- primary path: self-attention (q is k is v), fused QKV, bf16 MXU operands ---
    x = jax.random.normal(kx, (B, N, D_MODEL), jnp.float32)
    out_self = jax.block_until_ready(encoder_layer(x, x, x, packed))
    with jax.default_matmul_precision("highest"):
        ref_self = reference(x, x, x, params)
    # Tolerance reflects bf16 matmul operands (softmax normalization itself is now exact).
    np.testing.assert_allclose(np.asarray(out_self), np.asarray(ref_self),
                               rtol=5e-2, atol=5e-2)

    # --- general path: distinct q/k/v, f32 MXU operands ---
    queries = jax.random.normal(kq, (B, N, D_MODEL), jnp.float32)
    keys_in = jax.random.normal(kk, (B, N, D_MODEL), jnp.float32)
    values_in = jax.random.normal(kv, (B, N, D_MODEL), jnp.float32)
    out_x = jax.block_until_ready(
        encoder_layer(queries, keys_in, values_in, packed, compute_dtype=jnp.float32))
    with jax.default_matmul_precision("highest"):
        ref_x = reference(queries, keys_in, values_in, params)
    # Typically ~1e-5 off; 2e-2 bound stays safe regardless of the MXU f32 pass count.
    np.testing.assert_allclose(np.asarray(out_x), np.asarray(ref_x), rtol=2e-2, atol=2e-2)

    print("KERNEL_OK")
</pallas_src>

<mosaic_0001>
module attributes {stable_mosaic.version = 11 : i64} {
  func.func @encoder_layer_self_kernel(%arg0: i32, %arg1: memref<1x8x32xf32, #tpu.memory_space<vmem>>, %arg2: memref<32x256xbf16, #tpu.memory_space<vmem>>, %arg3: memref<96x32xbf16, #tpu.memory_space<vmem>>, %arg4: memref<12x64xf32, #tpu.memory_space<vmem>>, %arg5: memref<1x1x256xf32, #tpu.memory_space<vmem>>) attributes {dimension_semantics = [#tpu.dimension_semantics<parallel>], iteration_bounds = array<i64: 2>, scalar_prefetch = 0 : i64, scratch_operands = 0 : i64, tpu.core_type = #tpu.core_type<tc>, window_params = [{transform_indices = @transform_0, window_bounds = array<i64: 1, 8, 32>}, {pipeline_mode = #tpu.pipeline_mode<synchronous>, transform_indices = @transform_1, window_bounds = array<i64: 32, 256>}, {pipeline_mode = #tpu.pipeline_mode<synchronous>, transform_indices = @transform_2, window_bounds = array<i64: 96, 32>}, {pipeline_mode = #tpu.pipeline_mode<synchronous>, transform_indices = @transform_3, window_bounds = array<i64: 12, 64>}, {transform_indices = @transform_4, window_bounds = array<i64: 1, 1, 256>}]} {
    %c0 = arith.constant 0 : index
    %c0_0 = arith.constant 0 : index
    %c0_1 = arith.constant 0 : index
    %0 = vector.load %arg1[%c0, %c0_0, %c0_1] : memref<1x8x32xf32, #tpu.memory_space<vmem>>, vector<1x8x32xf32>
    %1 = vector.shape_cast %0 : vector<1x8x32xf32> to vector<8x32xf32>
    %c0_2 = arith.constant 0 : index
    %c0_3 = arith.constant 0 : index
    %2 = vector.load %arg2[%c0_2, %c0_3] : memref<32x256xbf16, #tpu.memory_space<vmem>>, vector<32x256xbf16>
    %c0_4 = arith.constant 0 : index
    %c0_5 = arith.constant 0 : index
    %3 = vector.load %arg4[%c0_4, %c0_5] : memref<12x64xf32, #tpu.memory_space<vmem>>, vector<12x64xf32>
    %4 = arith.truncf %1 : vector<8x32xf32> to vector<8x32xbf16>
    %5 = vector.extract_strided_slice %2 {offsets = [0, 0], sizes = [32, 96], strides = [1, 1]} : vector<32x256xbf16> to vector<32x96xbf16>
    %cst = arith.constant dense<0.000000e+00> : vector<8x96xf32>
    %6 = tpu.matmul %4, %5, %cst {dimension_numbers = #tpu.dot_dimension_numbers<[1], [0], [0], [1], [0, 0, 1, 1], [], []>} : vector<8x32xbf16>, vector<32x96xbf16>, vector<8x96xf32> -> vector<8x96xf32>
    %7 = vector.extract_strided_slice %6 {offsets = [0, 0], sizes = [8, 32], strides = [1, 1]} : vector<8x96xf32> to vector<8x32xf32>
    %8 = vector.extract_strided_slice %3 {offsets = [0, 0], sizes = [1, 32], strides = [1, 1]} : vector<12x64xf32> to vector<1x32xf32>
    %9 = vector.broadcast %8 : vector<1x32xf32> to vector<8x32xf32>
    %10 = arith.addf %7, %9 : vector<8x32xf32>
    %11 = vector.extract_strided_slice %6 {offsets = [0, 32], sizes = [8, 32], strides = [1, 1]} : vector<8x96xf32> to vector<8x32xf32>
    %12 = vector.extract_strided_slice %3 {offsets = [1, 0], sizes = [1, 32], strides = [1, 1]} : vector<12x64xf32> to vector<1x32xf32>
    %13 = vector.broadcast %12 : vector<1x32xf32> to vector<8x32xf32>
    %14 = arith.addf %11, %13 : vector<8x32xf32>
    %15 = vector.extract_strided_slice %6 {offsets = [0, 64], sizes = [8, 32], strides = [1, 1]} : vector<8x96xf32> to vector<8x32xf32>
    %16 = vector.extract_strided_slice %3 {offsets = [2, 0], sizes = [1, 32], strides = [1, 1]} : vector<12x64xf32> to vector<1x32xf32>
    %17 = vector.broadcast %16 : vector<1x32xf32> to vector<8x32xf32>
    %18 = arith.addf %15, %17 : vector<8x32xf32>
    %c0_6 = arith.constant 0 : index
    %c0_7 = arith.constant 0 : index
    %19 = vector.load %arg3[%c0_6, %c0_7] : memref<96x32xbf16, #tpu.memory_space<vmem>>, vector<96x32xbf16>
    %20 = vector.extract_strided_slice %19 {offsets = [0, 0], sizes = [32, 32], strides = [1, 1]} : vector<96x32xbf16> to vector<32x32xbf16>
    %21 = vector.extract_strided_slice %19 {offsets = [32, 0], sizes = [64, 32], strides = [1, 1]} : vector<96x32xbf16> to vector<64x32xbf16>
    %22 = vector.extract_strided_slice %2 {offsets = [0, 128], sizes = [32, 64], strides = [1, 1]} : vector<32x256xbf16> to vector<32x64xbf16>
    %23 = vector.extract_strided_slice %3 {offsets = [3, 0], sizes = [1, 32], strides = [1, 1]} : vector<12x64xf32> to vector<1x32xf32>
    %24 = vector.extract_strided_slice %3 {offsets = [4, 0], sizes = [1, 64], strides = [1, 1]} : vector<12x64xf32> to vector<1x64xf32>
    %25 = vector.extract_strided_slice %3 {offsets = [5, 0], sizes = [1, 32], strides = [1, 1]} : vector<12x64xf32> to vector<1x32xf32>
    %26 = vector.extract_strided_slice %3 {offsets = [6, 0], sizes = [1, 32], strides = [1, 1]} : vector<12x64xf32> to vector<1x32xf32>
    %27 = vector.extract_strided_slice %3 {offsets = [7, 0], sizes = [1, 32], strides = [1, 1]} : vector<12x64xf32> to vector<1x32xf32>
    %28 = vector.extract_strided_slice %3 {offsets = [8, 0], sizes = [1, 32], strides = [1, 1]} : vector<12x64xf32> to vector<1x32xf32>
    %29 = vector.extract_strided_slice %3 {offsets = [9, 0], sizes = [1, 32], strides = [1, 1]} : vector<12x64xf32> to vector<1x32xf32>
    %30 = vector.extract_strided_slice %3 {offsets = [10, 0], sizes = [1, 32], strides = [1, 1]} : vector<12x64xf32> to vector<1x32xf32>
    %31 = vector.extract_strided_slice %3 {offsets = [11, 0], sizes = [1, 32], strides = [1, 1]} : vector<12x64xf32> to vector<1x32xf32>
    %32 = vector.shape_cast %10 : vector<8x32xf32> to vector<1x8x32xf32>
    %33 = vector.shape_cast %14 : vector<8x32xf32> to vector<1x8x32xf32>
    %34 = vector.shape_cast %18 : vector<8x32xf32> to vector<1x8x32xf32>
    %35 = vector.extract_strided_slice %32 {offsets = [0, 0, 0], sizes = [1, 8, 8], strides = [1, 1, 1]} : vector<1x8x32xf32> to vector<1x8x8xf32>
    %36 = vector.extract_strided_slice %32 {offsets = [0, 0, 8], sizes = [1, 8, 8], strides = [1, 1, 1]} : vector<1x8x32xf32> to vector<1x8x8xf32>
    %37 = vector.extract_strided_slice %32 {offsets = [0, 0, 16], sizes = [1, 8, 8], strides = [1, 1, 1]} : vector<1x8x32xf32> to vector<1x8x8xf32>
    %38 = vector.extract_strided_slice %32 {offsets = [0, 0, 24], sizes = [1, 8, 8], strides = [1, 1, 1]} : vector<1x8x32xf32> to vector<1x8x8xf32>
    %39 = tpu.concatenate %35, %36, %37, %38 in 0 : vector<1x8x8xf32>, vector<1x8x8xf32>, vector<1x8x8xf32>, vector<1x8x8xf32> -> vector<4x8x8xf32>
    %40 = arith.truncf %39 : vector<4x8x8xf32> to vector<4x8x8xbf16>
    %41 = vector.extract_strided_slice %33 {offsets = [0, 0, 0], sizes = [1, 8, 8], strides = [1, 1, 1]} : vector<1x8x32xf32> to vector<1x8x8xf32>
    %42 = vector.extract_strided_slice %33 {offsets = [0, 0, 8], sizes = [1, 8, 8], strides = [1, 1, 1]} : vector<1x8x32xf32> to vector<1x8x8xf32>
    %43 = vector.extract_strided_slice %33 {offsets = [0, 0, 16], sizes = [1, 8, 8], strides = [1, 1, 1]} : vector<1x8x32xf32> to vector<1x8x8xf32>
    %44 = vector.extract_strided_slice %33 {offsets = [0, 0, 24], sizes = [1, 8, 8], strides = [1, 1, 1]} : vector<1x8x32xf32> to vector<1x8x8xf32>
    %45 = tpu.concatenate %41, %42, %43, %44 in 0 : vector<1x8x8xf32>, vector<1x8x8xf32>, vector<1x8x8xf32>, vector<1x8x8xf32> -> vector<4x8x8xf32>
    %46 = arith.truncf %45 : vector<4x8x8xf32> to vector<4x8x8xbf16>
    %47 = vector.extract_strided_slice %34 {offsets = [0, 0, 0], sizes = [1, 8, 8], strides = [1, 1, 1]} : vector<1x8x32xf32> to vector<1x8x8xf32>
    %48 = vector.extract_strided_slice %34 {offsets = [0, 0, 8], sizes = [1, 8, 8], strides = [1, 1, 1]} : vector<1x8x32xf32> to vector<1x8x8xf32>
    %49 = vector.extract_strided_slice %34 {offsets = [0, 0, 16], sizes = [1, 8, 8], strides = [1, 1, 1]} : vector<1x8x32xf32> to vector<1x8x8xf32>
    %50 = vector.extract_strided_slice %34 {offsets = [0, 0, 24], sizes = [1, 8, 8], strides = [1, 1, 1]} : vector<1x8x32xf32> to vector<1x8x8xf32>
    %51 = tpu.concatenate %47, %48, %49, %50 in 0 : vector<1x8x8xf32>, vector<1x8x8xf32>, vector<1x8x8xf32>, vector<1x8x8xf32> -> vector<4x8x8xf32>
    %52 = arith.truncf %51 : vector<4x8x8xf32> to vector<4x8x8xbf16>
    "tpu.trace_start"() <{level = 10 : i32, message = "gnd,gmd->gnm"}> : () -> ()
    %cst_8 = arith.constant dense<0.000000e+00> : vector<4x8x8xf32>
    %53 = tpu.matmul %40, %46, %cst_8 {dimension_numbers = #tpu.dot_dimension_numbers<[2], [2], [1], [1], [0, 0, 0, 1, 1, 1], [0], [0]>} : vector<4x8x8xbf16>, vector<4x8x8xbf16>, vector<4x8x8xf32> -> vector<4x8x8xf32>
    "tpu.trace_stop"() : () -> ()
    %cst_9 = arith.constant 0.353553385 : f32
    %54 = vector.broadcast %cst_9 : f32 to vector<4x8x8xf32>
    %55 = arith.mulf %53, %54 : vector<4x8x8xf32>
    %cst_10 = arith.constant dense<0xFF800000> : vector<4x8xf32>
    %56 = vector.multi_reduction <maximumf>, %55, %cst_10 [2] : vector<4x8x8xf32> to vector<4x8xf32>
    %57 = vector.shape_cast %56 : vector<4x8xf32> to vector<4x8x1xf32>
    %58 = vector.broadcast %57 : vector<4x8x1xf32> to vector<4x8x8xf32>
    %59 = arith.subf %55, %58 : vector<4x8x8xf32>
    %60 = math.exp %59 : vector<4x8x8xf32>
    %cst_11 = arith.constant dense<0.000000e+00> : vector<4x8xf32>
    %61 = vector.multi_reduction <add>, %60, %cst_11 [2] : vector<4x8x8xf32> to vector<4x8xf32>
    %62 = vector.shape_cast %61 : vector<4x8xf32> to vector<4x8x1xf32>
    %63 = vector.broadcast %62 : vector<4x8x1xf32> to vector<4x8x8xf32>
    %64 = arith.divf %60, %63 : vector<4x8x8xf32>
    %65 = arith.truncf %64 : vector<4x8x8xf32> to vector<4x8x8xbf16>
    "tpu.trace_start"() <{level = 10 : i32, message = "gnm,gmd->gnd"}> : () -> ()
    %cst_12 = arith.constant dense<0.000000e+00> : vector<4x8x8xf32>
    %66 = tpu.matmul %65, %52, %cst_12 {dimension_numbers = #tpu.dot_dimension_numbers<[2], [1], [1], [2], [0, 0, 0, 1, 1, 2], [0], [0]>} : vector<4x8x8xbf16>, vector<4x8x8xbf16>, vector<4x8x8xf32> -> vector<4x8x8xf32>
    "tpu.trace_stop"() : () -> ()
    %67 = vector.extract_strided_slice %66 {offsets = [0, 0, 0], sizes = [1, 8, 8], strides = [1, 1, 1]} : vector<4x8x8xf32> to vector<1x8x8xf32>
    %68 = vector.extract_strided_slice %66 {offsets = [1, 0, 0], sizes = [1, 8, 8], strides = [1, 1, 1]} : vector<4x8x8xf32> to vector<1x8x8xf32>
    %69 = vector.extract_strided_slice %66 {offsets = [2, 0, 0], sizes = [1, 8, 8], strides = [1, 1, 1]} : vector<4x8x8xf32> to vector<1x8x8xf32>
    %70 = vector.extract_strided_slice %66 {offsets = [3, 0, 0], sizes = [1, 8, 8], strides = [1, 1, 1]} : vector<4x8x8xf32> to vector<1x8x8xf32>
    %71 = tpu.concatenate %67, %68, %69, %70 in 2 : vector<1x8x8xf32>, vector<1x8x8xf32>, vector<1x8x8xf32>, vector<1x8x8xf32> -> vector<1x8x32xf32>
    %72 = vector.shape_cast %71 : vector<1x8x32xf32> to vector<8x32xf32>
    %73 = arith.truncf %72 : vector<8x32xf32> to vector<8x32xbf16>
    %cst_13 = arith.constant dense<0.000000e+00> : vector<8x32xf32>
    %74 = tpu.matmul %73, %20, %cst_13 {dimension_numbers = #tpu.dot_dimension_numbers<[1], [0], [0], [1], [0, 0, 1, 1], [], []>} : vector<8x32xbf16>, vector<32x32xbf16>, vector<8x32xf32> -> vector<8x32xf32>
    %75 = vector.broadcast %23 : vector<1x32xf32> to vector<8x32xf32>
    %76 = arith.addf %74, %75 : vector<8x32xf32>
    %77 = arith.addf %1, %76 : vector<8x32xf32>
    %cst_14 = arith.constant dense<0.000000e+00> : vector<8xf32>
    %78 = vector.multi_reduction <add>, %77, %cst_14 [1] : vector<8x32xf32> to vector<8xf32>
    %79 = vector.shape_cast %78 : vector<8xf32> to vector<8x1xf32>
    %cst_15 = arith.constant 3.200000e+01 : f32
    %80 = vector.broadcast %cst_15 : f32 to vector<8x1xf32>
    %81 = arith.divf %79, %80 : vector<8x1xf32>
    %82 = vector.broadcast %81 : vector<8x1xf32> to vector<8x32xf32>
    %83 = arith.subf %77, %82 : vector<8x32xf32>
    %84 = arith.mulf %83, %83 : vector<8x32xf32>
    %cst_16 = arith.constant dense<0.000000e+00> : vector<8xf32>
    %85 = vector.multi_reduction <add>, %84, %cst_16 [1] : vector<8x32xf32> to vector<8xf32>
    %86 = vector.shape_cast %85 : vector<8xf32> to vector<8x1xf32>
    %cst_17 = arith.constant 3.200000e+01 : f32
    %87 = vector.broadcast %cst_17 : f32 to vector<8x1xf32>
    %88 = arith.divf %86, %87 : vector<8x1xf32>
    %89 = vector.broadcast %81 : vector<8x1xf32> to vector<8x32xf32>
    %90 = arith.subf %77, %89 : vector<8x32xf32>
    %cst_18 = arith.constant 9.99999974E-6 : f32
    %91 = vector.broadcast %cst_18 : f32 to vector<8x1xf32>
    %92 = arith.addf %88, %91 : vector<8x1xf32>
    %93 = math.rsqrt %92 : vector<8x1xf32>
    %94 = vector.broadcast %93 : vector<8x1xf32> to vector<8x32xf32>
    %95 = arith.mulf %90, %94 : vector<8x32xf32>
    %96 = vector.broadcast %26 : vector<1x32xf32> to vector<8x32xf32>
    %97 = arith.mulf %95, %96 : vector<8x32xf32>
    %98 = vector.broadcast %27 : vector<1x32xf32> to vector<8x32xf32>
    %99 = arith.addf %97, %98 : vector<8x32xf32>
    %100 = arith.addf %1, %99 : vector<8x32xf32>
    %cst_19 = arith.constant dense<0.000000e+00> : vector<8xf32>
    %101 = vector.multi_reduction <add>, %100, %cst_19 [1] : vector<8x32xf32> to vector<8xf32>
    %102 = vector.shape_cast %101 : vector<8xf32> to vector<8x1xf32>
    %cst_20 = arith.constant 3.200000e+01 : f32
    %103 = vector.broadcast %cst_20 : f32 to vector<8x1xf32>
    %104 = arith.divf %102, %103 : vector<8x1xf32>
    %105 = vector.broadcast %104 : vector<8x1xf32> to vector<8x32xf32>
    %106 = arith.subf %100, %105 : vector<8x32xf32>
    %107 = arith.mulf %106, %106 : vector<8x32xf32>
    %cst_21 = arith.constant dense<0.000000e+00> : vector<8xf32>
    %108 = vector.multi_reduction <add>, %107, %cst_21 [1] : vector<8x32xf32> to vector<8xf32>
    %109 = vector.shape_cast %108 : vector<8xf32> to vector<8x1xf32>
    %cst_22 = arith.constant 3.200000e+01 : f32
    %110 = vector.broadcast %cst_22 : f32 to vector<8x1xf32>
    %111 = arith.divf %109, %110 : vector<8x1xf32>
    %112 = vector.broadcast %104 : vector<8x1xf32> to vector<8x32xf32>
    %113 = arith.subf %100, %112 : vector<8x32xf32>
    %cst_23 = arith.constant 9.99999974E-6 : f32
    %114 = vector.broadcast %cst_23 : f32 to vector<8x1xf32>
    %115 = arith.addf %111, %114 : vector<8x1xf32>
    %116 = math.rsqrt %115 : vector<8x1xf32>
    %117 = vector.broadcast %116 : vector<8x1xf32> to vector<8x32xf32>
    %118 = arith.mulf %113, %117 : vector<8x32xf32>
    %119 = vector.broadcast %28 : vector<1x32xf32> to vector<8x32xf32>
    %120 = arith.mulf %118, %119 : vector<8x32xf32>
    %121 = vector.broadcast %29 : vector<1x32xf32> to vector<8x32xf32>
    %122 = arith.addf %120, %121 : vector<8x32xf32>
    %123 = arith.truncf %122 : vector<8x32xf32> to vector<8x32xbf16>
    %cst_24 = arith.constant dense<0.000000e+00> : vector<8x64xf32>
    %124 = tpu.matmul %123, %22, %cst_24 {dimension_numbers = #tpu.dot_dimension_numbers<[1], [0], [0], [1], [0, 0, 1, 1], [], []>} : vector<8x32xbf16>, vector<32x64xbf16>, vector<8x64xf32> -> vector<8x64xf32>
    %125 = vector.broadcast %24 : vector<1x64xf32> to vector<8x64xf32>
    %126 = arith.addf %124, %125 : vector<8x64xf32>
    %cst_25 = arith.constant 0.000000e+00 : f32
    %127 = vector.broadcast %cst_25 : f32 to vector<8x64xf32>
    %128 = arith.maximumf %126, %127 : vector<8x64xf32>
    %129 = arith.truncf %128 : vector<8x64xf32> to vector<8x64xbf16>
    %cst_26 = arith.constant dense<0.000000e+00> : vector<8x32xf32>
    %130 = tpu.matmul %129, %21, %cst_26 {dimension_numbers = #tpu.dot_dimension_numbers<[1], [0], [0], [1], [0, 0, 1, 1], [], []>} : vector<8x64xbf16>, vector<64x32xbf16>, vector<8x32xf32> -> vector<8x32xf32>
    %131 = vector.broadcast %25 : vector<1x32xf32> to vector<8x32xf32>
    %132 = arith.addf %130, %131 : vector<8x32xf32>
    %133 = arith.addf %122, %132 : vector<8x32xf32>
    %cst_27 = arith.constant dense<0.000000e+00> : vector<8xf32>
    %134 = vector.multi_reduction <add>, %133, %cst_27 [1] : vector<8x32xf32> to vector<8xf32>
    %135 = vector.shape_cast %134 : vector<8xf32> to vector<8x1xf32>
    %cst_28 = arith.constant 3.200000e+01 : f32
    %136 = vector.broadcast %cst_28 : f32 to vector<8x1xf32>
    %137 = arith.divf %135, %136 : vector<8x1xf32>
    %138 = vector.broadcast %137 : vector<8x1xf32> to vector<8x32xf32>
    %139 = arith.subf %133, %138 : vector<8x32xf32>
    %140 = arith.mulf %139, %139 : vector<8x32xf32>
    %cst_29 = arith.constant dense<0.000000e+00> : vector<8xf32>
    %141 = vector.multi_reduction <add>, %140, %cst_29 [1] : vector<8x32xf32> to vector<8xf32>
    %142 = vector.shape_cast %141 : vector<8xf32> to vector<8x1xf32>
    %cst_30 = arith.constant 3.200000e+01 : f32
    %143 = vector.broadcast %cst_30 : f32 to vector<8x1xf32>
    %144 = arith.divf %142, %143 : vector<8x1xf32>
    %145 = vector.broadcast %137 : vector<8x1xf32> to vector<8x32xf32>
    %146 = arith.subf %133, %145 : vector<8x32xf32>
    %cst_31 = arith.constant 9.99999974E-6 : f32
    %147 = vector.broadcast %cst_31 : f32 to vector<8x1xf32>
    %148 = arith.addf %144, %147 : vector<8x1xf32>
    %149 = math.rsqrt %148 : vector<8x1xf32>
    %150 = vector.broadcast %149 : vector<8x1xf32> to vector<8x32xf32>
    %151 = arith.mulf %146, %150 : vector<8x32xf32>
    %152 = vector.broadcast %30 : vector<1x32xf32> to vector<8x32xf32>
    %153 = arith.mulf %151, %152 : vector<8x32xf32>
    %154 = vector.broadcast %31 : vector<1x32xf32> to vector<8x32xf32>
    %155 = arith.addf %153, %154 : vector<8x32xf32>
    %156 = vector.shape_cast %155 : vector<8x32xf32> to vector<1x8x32xf32>
    %157 = vector.extract_strided_slice %156 {offsets = [0, 0, 0], sizes = [1, 1, 32], strides = [1, 1, 1]} : vector<1x8x32xf32> to vector<1x1x32xf32>
    %158 = vector.extract_strided_slice %156 {offsets = [0, 1, 0], sizes = [1, 1, 32], strides = [1, 1, 1]} : vector<1x8x32xf32> to vector<1x1x32xf32>
    %159 = vector.extract_strided_slice %156 {offsets = [0, 2, 0], sizes = [1, 1, 32], strides = [1, 1, 1]} : vector<1x8x32xf32> to vector<1x1x32xf32>
    %160 = vector.extract_strided_slice %156 {offsets = [0, 3, 0], sizes = [1, 1, 32], strides = [1, 1, 1]} : vector<1x8x32xf32> to vector<1x1x32xf32>
    %161 = vector.extract_strided_slice %156 {offsets = [0, 4, 0], sizes = [1, 1, 32], strides = [1, 1, 1]} : vector<1x8x32xf32> to vector<1x1x32xf32>
    %162 = vector.extract_strided_slice %156 {offsets = [0, 5, 0], sizes = [1, 1, 32], strides = [1, 1, 1]} : vector<1x8x32xf32> to vector<1x1x32xf32>
    %163 = vector.extract_strided_slice %156 {offsets = [0, 6, 0], sizes = [1, 1, 32], strides = [1, 1, 1]} : vector<1x8x32xf32> to vector<1x1x32xf32>
    %164 = vector.extract_strided_slice %156 {offsets = [0, 7, 0], sizes = [1, 1, 32], strides = [1, 1, 1]} : vector<1x8x32xf32> to vector<1x1x32xf32>
    %165 = tpu.concatenate %157, %158, %159, %160, %161, %162, %163, %164 in 2 : vector<1x1x32xf32>, vector<1x1x32xf32>, vector<1x1x32xf32>, vector<1x1x32xf32>, vector<1x1x32xf32>, vector<1x1x32xf32>, vector<1x1x32xf32>, vector<1x1x32xf32> -> vector<1x1x256xf32>
    %c0_32 = arith.constant 0 : index
    %c0_33 = arith.constant 0 : index
    %c0_34 = arith.constant 0 : index
    %166 = vector.load %arg5[%c0_32, %c0_33, %c0_34] : memref<1x1x256xf32, #tpu.memory_space<vmem>>, vector<1x1x256xf32>
    tpu.vector_store %arg5[%c0_32, %c0_33, %c0_34], %165 {strides = array<i32>} : memref<1x1x256xf32, #tpu.memory_space<vmem>>, vector<1x1x256xf32>,
    return
  }
  func.func @transform_0(%arg0: i32) -> (i32, i32, i32) {
    %c0_i32 = arith.constant 0 : i32
    %c0_i32_0 = arith.constant 0 : i32
    %c0_i32_1 = arith.constant 0 : i32
    return %arg0, %c0_i32, %c0_i32_0 : i32, i32, i32
  }
  func.func @transform_1(%arg0: i32) -> (i32, i32) {
    %c0_i32 = arith.constant 0 : i32
    %c0_i32_0 = arith.constant 0 : i32
    %c0_i32_1 = arith.constant 0 : i32
    return %c0_i32, %c0_i32_0 : i32, i32
  }
  func.func @transform_2(%arg0: i32) -> (i32, i32) {
    %c0_i32 = arith.constant 0 : i32
    %c0_i32_0 = arith.constant 0 : i32
    %c0_i32_1 = arith.constant 0 : i32
    return %c0_i32, %c0_i32_0 : i32, i32
  }
  func.func @transform_3(%arg0: i32) -> (i32, i32) {
    %c0_i32 = arith.constant 0 : i32
    %c0_i32_0 = arith.constant 0 : i32
    %c0_i32_1 = arith.constant 0 : i32
    return %c0_i32, %c0_i32_0 : i32, i32
  }
  func.func @transform_4(%arg0: i32) -> (i32, i32, i32) {
    %c0_i32 = arith.constant 0 : i32
    %c0_i32_0 = arith.constant 0 : i32
    %c0_i32_1 = arith.constant 0 : i32
    return %arg0, %c0_i32, %c0_i32_0 : i32, i32, i32
  }
}

</mosaic_0001>

<llo_original>
// kernel: tpu_custom_call.1
$region0: #{tpu_custom_call.1}
  #allocation0 [shape = 'u32[]', space=smem, size = 0x4, offset = 0x4, fixed_abs, tag = 'smem constant byte address 0x4 - core index']
  #allocation1 [shape = 'u32[144,128]{1,0:T(1,128)}', space=vmem, size = 0x12000, scoped, tag = 'internal scratch']
  %s0 = inlined_call_operand.vmem [shape: f32[2,8,32], index: 0, kind: input, shape index: {}]
  %s1 = inlined_call_operand.vmem [shape: bf16[32,256], index: 1, kind: input, shape index: {}]
  %s2 = inlined_call_operand.vmem [shape: bf16[96,32], index: 2, kind: input, shape index: {}]
  %s3 = inlined_call_operand.vmem [shape: f32[12,64], index: 3, kind: input, shape index: {}]
  %s4 = inlined_call_operand.hbm [shape: f32[2,1,256], index: 4, kind: output, shape index: {}]
  %s5 = sld [smem:[#allocation0]]
  $region49: #{tpu_custom_call.1} parent=0
    _
  %s7 = ssub.s32 1, %s5
  %s8 = scalar_select 0, %s7, %s5
  $region1: #{tpu_custom_call.1} parent=0
    #allocation2 [shape = 'u8[2048]{0}', space=vmem, size = 0x800, scoped, tag = 'output window, operand 0']
    #allocation3 [shape = 's32[2]{0}', space=sflag, size = 0x8, scoped, tag = 'scoped memory for tpu_custom_call.1']
    %9 = vsyncpa [#allocation3], 0
    %s10 = scalar_lea.sflag [#allocation3], 1
    %11 = vsyncpa %s10, 0
    loop: start=0, step=1, limit=4
    $region2: #{tpu_custom_call.1} parent=1 // loop_pre_header
      _
    $region3: #{tpu_custom_call.1} parent=1 // loop_header
      %s13 = sphi 0, %s17
      %p14 = scmp.ge.s32.totalorder %s13, 4
      %s23 = sphi 0, %s25
      %s26 = sphi 0, %s23
      %s27 = sphi 0, %s26
      %s43 = sphi 0, %s27
      %s47 = sphi 0, %s47
      %s49 = sphi 0, %s47
      %s50 = sphi 0, %s49
      %s64 = sphi 0, %s50
      %s68 = sphi 0, %s68
      %s70 = sphi 0, %s68
      %s71 = sphi 0, %s70
      %s85 = sphi 0, %s71
      %s89 = sphi 0, %s89
      %s91 = sphi 0, %s89
      %s92 = sphi 0, %s91
      %s106 = sphi 0, %s92
      %s112 = sphi 0, %s114
      %s115 = sphi 0, %s112
      %s116 = sphi 0, %s115
      %s132 = sphi 0, %s116
    $region4: #{tpu_custom_call.1} parent=1 // loop_header_branch
      %16 = sbr.rel (%p14) target = $region8
    $region5: #{tpu_custom_call.1} parent=1 // loop_body
      %s18 = ssub.s32 %s13, 1
      %s19 = ssub.s32 %s13, 2
      %s20 = sadd.s32 %s13, 1
      %s21 = ssub.s32 %s13, %s20
      %p22 = scmp.eq.s32.totalorder %s21, 0
      %s24 = sadd.s32 %s23, 1
      %s25 = scalar_select %p22, %s23, %s24
      %p28 = pneg %p22
      %p29 = scmp.eq.s32.totalorder %s13, 1
      %p30 = por %p28, %p29
      %p31 = scmp.ne.s32.totalorder %s23, %s26
      %p32 = scmp.eq.s32.totalorder %s13, 0
      %p33 = por %p31, %p32
      %p34 = scmp.ne.s32.totalorder %s23, %s26
      %p35 = scmp.eq.s32.totalorder %s18, 1
      %p36 = por %p34, %p35
      %p37 = scmp.ne.s32.totalorder %s26, %s27
      %p38 = scmp.eq.s32.totalorder %s18, 0
      %p39 = por %p37, %p38
      %p40 = scmp.ne.s32.totalorder %s26, %s27
      %p41 = scmp.eq.s32.totalorder %s19, 1
      %p42 = por %p40, %p41
      %p44 = scmp.ne.s32.totalorder %s27, %s43
      %p45 = scmp.eq.s32.totalorder %s19, 0
      %p46 = por %p44, %p45
      %s48 = sadd.s32 %s47, 1
      %p51 = scmp.eq.s32.totalorder %s13, 1
      %p52 = scmp.ne.s32.totalorder %s47, %s49
      %p53 = scmp.eq.s32.totalorder %s13, 0
      %p54 = por %p52, %p53
      %p55 = scmp.ne.s32.totalorder %s47, %s49
      %p56 = scmp.eq.s32.totalorder %s18, 1
      %p57 = por %p55, %p56
      %p58 = scmp.ne.s32.totalorder %s49, %s50
      %p59 = scmp.eq.s32.totalorder %s18, 0
      %p60 = por %p58, %p59
      %p61 = scmp.ne.s32.totalorder %s49, %s50
      %p62 = scmp.eq.s32.totalorder %s19, 1
      %p63 = por %p61, %p62
      %p65 = scmp.ne.s32.totalorder %s50, %s64
      %p66 = scmp.eq.s32.totalorder %s19, 0
      %p67 = por %p65, %p66
      %s69 = sadd.s32 %s68, 1
      %p72 = scmp.eq.s32.totalorder %s13, 1
      %p73 = scmp.ne.s32.totalorder %s68, %s70
      %p74 = scmp.eq.s32.totalorder %s13, 0
      %p75 = por %p73, %p74
      %p76 = scmp.ne.s32.totalorder %s68, %s70
      %p77 = scmp.eq.s32.totalorder %s18, 1
      %p78 = por %p76, %p77
      %p79 = scmp.ne.s32.totalorder %s70, %s71
      %p80 = scmp.eq.s32.totalorder %s18, 0
      %p81 = por %p79, %p80
      %p82 = scmp.ne.s32.totalorder %s70, %s71
      %p83 = scmp.eq.s32.totalorder %s19, 1
      %p84 = por %p82, %p83
      %p86 = scmp.ne.s32.totalorder %s71, %s85
      %p87 = scmp.eq.s32.totalorder %s19, 0
      %p88 = por %p86, %p87
      %s90 = sadd.s32 %s89, 1
      %p93 = scmp.eq.s32.totalorder %s13, 1
      %p94 = scmp.ne.s32.totalorder %s89, %s91
      %p95 = scmp.eq.s32.totalorder %s13, 0
      %p96 = por %p94, %p95
      %p97 = scmp.ne.s32.totalorder %s89, %s91
      %p98 = scmp.eq.s32.totalorder %s18, 1
      %p99 = por %p97, %p98
      %p100 = scmp.ne.s32.totalorder %s91, %s92
      %p101 = scmp.eq.s32.totalorder %s18, 0
      %p102 = por %p100, %p101
      %p103 = scmp.ne.s32.totalorder %s91, %s92
      %p104 = scmp.eq.s32.totalorder %s19, 1
      %p105 = por %p103, %p104
      %p107 = scmp.ne.s32.totalorder %s92, %s106
      %p108 = scmp.eq.s32.totalorder %s19, 0
      %p109 = por %p107, %p108
      %s110 = ssub.s32 %s13, %s20
      %p111 = scmp.eq.s32.totalorder %s110, 0
      %s113 = sadd.s32 %s112, 1
      %s114 = scalar_select %p111, %s112, %s113
      %p117 = pneg %p111
      %p118 = scmp.eq.s32.totalorder %s13, 1
      %p119 = por %p117, %p118
      %p120 = scmp.ne.s32.totalorder %s112, %s115
      %p121 = scmp.eq.s32.totalorder %s13, 0
      %p122 = por %p120, %p121
      %p123 = scmp.ne.s32.totalorder %s112, %s115
      %p124 = scmp.eq.s32.totalorder %s18, 1
      %p125 = por %p123, %p124
      %p126 = scmp.ne.s32.totalorder %s115, %s116
      %p127 = scmp.eq.s32.totalorder %s18, 0
      %p128 = por %p126, %p127
      %p129 = scmp.ne.s32.totalorder %s115, %s116
      %p130 = scmp.eq.s32.totalorder %s19, 1
      %p131 = por %p129, %p130
      %p133 = scmp.ne.s32.totalorder %s116, %s132
      %p134 = scmp.eq.s32.totalorder %s19, 0
      %p135 = por %p133, %p134
      %p136 = scmp.le.s32.totalorder 1, %s13
      %p137 = scmp.lt.s32.totalorder %s13, 3
      %p138 = pnand %p136, %p137
      %p139 = pneg %p138
      // Predicated region
      $region9: #{tpu_custom_call.1} parent=5 // pred_check
        _
      $region10: #{tpu_custom_call.1} parent=5 // pred_check_branch
        %141 = sbr.rel (%p138) target = $region12
      $region11: #{tpu_custom_call.1} parent=5 // pred_region
        %s142 = ssub.s32 %s13, 1
        // Predicated region
        $region13: #{tpu_custom_call.1} parent=11 // pred_check
          %p143 = pneg %p60
        $region14: #{tpu_custom_call.1} parent=11 // pred_check_branch
          %145 = sbr.rel (%p143) target = $region16
        $region15: #{tpu_custom_call.1} parent=11 // pred_region
          _
        $region16: #{tpu_custom_call.1} parent=11 // pred_fallthru
          _
        // Predicated region
        $region17: #{tpu_custom_call.1} parent=11 // pred_check
          %p146 = pneg %p81
        $region18: #{tpu_custom_call.1} parent=11 // pred_check_branch
          %148 = sbr.rel (%p146) target = $region20
        $region19: #{tpu_custom_call.1} parent=11 // pred_region
          _
        $region20: #{tpu_custom_call.1} parent=11 // pred_fallthru
          _
        // Predicated region
        $region21: #{tpu_custom_call.1} parent=11 // pred_check
          %p149 = pneg %p102
        $region22: #{tpu_custom_call.1} parent=11 // pred_check_branch
          %151 = sbr.rel (%p149) target = $region24
        $region23: #{tpu_custom_call.1} parent=11 // pred_region
          _
        $region24: #{tpu_custom_call.1} parent=11 // pred_fallthru
          _
      $region12: #{tpu_custom_call.1} parent=5 // pred_fallthru
        _
      %p152 = scmp.lt.s32.totalorder %s13, 2
      // Predicated region
      $region25: #{tpu_custom_call.1} parent=5 // pred_check
        %p153 = pneg %p152
      $region26: #{tpu_custom_call.1} parent=5 // pred_check_branch
        %155 = sbr.rel (%p153) target = $region28
      $region27: #{tpu_custom_call.1} parent=5 // pred_region
        // Predicated region
        $region29: #{tpu_custom_call.1} parent=27 // pred_check
          %p156 = pneg %p33
        $region30: #{tpu_custom_call.1} parent=27 // pred_check_branch
          %158 = sbr.rel (%p156) target = $region32
        $region31: #{tpu_custom_call.1} parent=27 // pred_region
          %p159 = scmp.lt.s32.totalorder %s13, 1
          %s160 = scalar_select %p159, %s13, 1
          %s161 = smul.addr %s160, 8
          %s162 = scalar_lea.vmem %s0, %s161
        $region32: #{tpu_custom_call.1} parent=27 // pred_fallthru
          _
      $region28: #{tpu_custom_call.1} parent=5 // pred_fallthru
        _
      %p163 = scmp.le.s32.totalorder 1, %s13
      %p164 = scmp.lt.s32.totalorder %s13, 3
      %p165 = pnand %p163, %p164
      %p166 = pneg %p165
      // Predicated region
      $region33: #{tpu_custom_call.1} parent=5 // pred_check
        _
      $region34: #{tpu_custom_call.1} parent=5 // pred_check_branch
        %168 = sbr.rel (%p165) target = $region36
      $region35: #{tpu_custom_call.1} parent=5 // pred_region
        %s169 = ssub.s32 %s13, 1
        %p170 = scmp.lt.s32.totalorder %s18, 1
        %s171 = scalar_select %p170, %s18, 1
        %s172 = smul.addr %s171, 8
        %s173 = scalar_lea.vmem %s0, %s172
        %p174 = pneg %p39
        %p175 = pneg %p36
        %p176 = pneg %p60
        %p177 = pneg %p57
        %p178 = pneg %p81
        %p179 = pneg %p78
        %p180 = pneg %p102
        %p181 = pneg %p99
        %p182 = pneg %p128
        %p183 = pneg %p125
        %s184 = sand.u32 %s115, 1
        %s185 = scalar_lea.sflag [#allocation3], %s184
        %s186 = sand.u32 %s115, 1
        %s187 = smul.addr %s186, 2
        %s188 = scalar_lea.vmem [#allocation2], %s187
        %p189 = scmp.lt.s32.totalorder %s18, 1
        %s190 = scalar_select %p189, %s18, 1
        %s191 = smul.addr %s190, 8
        %s192 = scalar_lea.vmem %s0, %s191
        %v194 = vld [vmem:[%s192] sm:$0xff]
        %v195 = vld [vmem:[%s1] sm:$0xff]
        %v196 = vld [vmem:[%s1 + $0x8] sm:$0xff]
        %v197 = vld [vmem:[%s1 + $0x10] sm:$0xff]
        %v198 = vld [vmem:[%s1 + $0x18] sm:$0xff]
        %v199 = vld [vmem:[%s3] sm:$0xff]
        %v200 = vld [vmem:[%s3 + $0x8] sm:$0xf]
        %v201 = vpack.c.bf16 %v194, %v194
        %v206 = vunpack.c.l.b16 %v195
        %v207 = vunpack.c.l.b16 %v196
        %v208 = vunpack.c.l.b16 %v197
        %v209 = vunpack.c.l.b16 %v198
        %v210 = vpack.c.b16 %v207, %v206
        %v211 = vpack.c.b16 %v209, %v208
        %vm214 = vcmask 261120
        %v216 = vsel %vm214, %v201, 0
        %218 = vmatprep.subr.bf16.mxu0 0
        %219 = vmatpush1.bf16.msra.mxu0 %v210
        %220 = vmatprep.subr.bf16.mxu0 0
        %221 = vmatpush1.bf16.msra.mxu0 %v211
        %222 = vmatprep.subr.bf16.mxu0 0
        %223 = vmatpush1.bf16.msra.mxu0 0
        %224 = vmatprep.subr.bf16.mxu0 0
        %225 = vmatpush1.bf16.msra.mxu0 0
        %226 = vmatprep.subr.bf16.mxu0 0
        %227 = vmatpush1.bf16.msra.mxu0 0
        %228 = vmatprep.subr.bf16.mxu0 0
        %229 = vmatpush1.bf16.msra.mxu0 0
        %230 = vmatprep.subr.bf16.mxu0 0
        %231 = vmatpush1.bf16.msra.mxu0 0
        %232 = vmatprep.subr.bf16.mxu0 0
        %233 = vmatpush1.bf16.msra.mxu0 0
        %234 = vmatprep.subr.bf16.mxu0 0
        %235 = vmatpush1.bf16.msra.mxu0 0
        %236 = vmatprep.subr.bf16.mxu0 0
        %237 = vmatpush1.bf16.msra.mxu0 0
        %238 = vmatprep.subr.bf16.mxu0 0
        %239 = vmatpush1.bf16.msra.mxu0 0
        %240 = vmatprep.subr.bf16.mxu0 0
        %241 = vmatpush1.bf16.msra.mxu0 0
        %242 = vmatprep.subr.bf16.mxu0 0
        %243 = vmatpush1.bf16.msra.mxu0 0
        %244 = vmatprep.subr.bf16.mxu0 0
        %245 = vmatpush1.bf16.msra.mxu0 0
        %246 = vmatprep.subr.bf16.mxu0 0
        %247 = vmatpush1.bf16.msra.mxu0 0
        %248 = vmatprep.subr.bf16.mxu0 0
        %249 = vmatpush1.bf16.msra.mxu0 0
        %250 = vmatprep.mubr.bf16.mxu0 0
        %251 = vmatmul.mubr.bf16.gmra.mrb[0].mxu0 %v216
        %v252 = vpop.f32.mrb[0].mxu0
        %v253 = vadd.f32 0.0, %v252
        %v254 = vpop.f32.mrb[0].mxu0
        %v255 = vpop.f32.mrb[0].mxu0
        %v256 = vpop.f32.mrb[0].mxu0
        %257 = vdwg.mxu0
        %v258 = vlaneseq
        %v259 = vshrl.u32 %v258, 7
        %v260 = vsub.s32 0, %v259
        %v261 = vrot.slane %v199, %v260
        %v262 = vadd.f32 %v253, %v261
        %v263 = vlaneseq
        %v264 = vshrl.u32 %v263, 7
        %v265 = vsub.s32 1, %v264
        %v266 = vrot.slane %v199, %v265
        %268 = vrot.lane.b32.xlu0 %v266, 32
        %v269 = vpop.permute.xlu0 %268
        %v271 = vadd.f32 %v253, %v269
        %v272 = vlaneseq
        %v273 = vshrl.u32 %v272, 7
        %v274 = vsub.s32 2, %v273
        %v275 = vrot.slane %v199, %v274
        %277 = vrot.lane.b32.xlu0 %v275, 64
        %v278 = vpop.permute.xlu0 %277
        %v280 = vadd.f32 %v253, %v278
        %v281 = vld [vmem:[%s2] sm:$0xf]
        %v282 = vld [vmem:[%s2 + $0x4] sm:$0xf]
        %v283 = vld [vmem:[%s2 + $0x8] sm:$0xf]
        %v284 = vld [vmem:[%s2 + $0xc] sm:$0xf]
        %v285 = vld [vmem:[%s2 + $0x10] sm:$0xf]
        %v286 = vld [vmem:[%s2 + $0x14] sm:$0xf]
        %v287 = vld [vmem:[%s2 + $0x18] sm:$0xf]
        %v288 = vld [vmem:[%s2 + $0x1c] sm:$0xf]
        %v289 = vld [vmem:[%s2 + $0x20] sm:$0xf]
        %v290 = vld [vmem:[%s2 + $0x24] sm:$0xf]
        %v291 = vld [vmem:[%s2 + $0x28] sm:$0xf]
        %v292 = vld [vmem:[%s2 + $0x2c] sm:$0xf]
        %294 = vrot.lane.b32.xlu0 %v262, 120
        %v295 = vpop.permute.xlu0 %294
        %297 = vrot.lane.b32.xlu0 %v262, 112
        %v298 = vpop.permute.xlu0 %297
        %300 = vrot.lane.b32.xlu0 %v262, 104
        %v301 = vpop.permute.xlu0 %300
        %v303 = vpack.c.bf16 %v262, %v262
        %v304 = vpack.c.bf16 %v295, %v295
        %v305 = vpack.c.bf16 %v298, %v298
        %v306 = vpack.c.bf16 %v301, %v301
        %308 = vrot.lane.b32.xlu0 %v271, 120
        %v309 = vpop.permute.xlu0 %308
        %311 = vrot.lane.b32.xlu0 %v271, 112
        %v312 = vpop.permute.xlu0 %311
        %314 = vrot.lane.b32.xlu0 %v271, 104
        %v315 = vpop.permute.xlu0 %314
        %v317 = vpack.c.bf16 %v271, %v271
        %v318 = vpack.c.bf16 %v309, %v309
        %v319 = vpack.c.bf16 %v312, %v312
        %v320 = vpack.c.bf16 %v315, %v315
        %322 = vrot.lane.b32.xlu0 %v280, 120
        %v323 = vpop.permute.xlu0 %322
        %325 = vrot.lane.b32.xlu0 %v280, 112
        %v326 = vpop.permute.xlu0 %325
        %328 = vrot.lane.b32.xlu0 %v280, 104
        %v329 = vpop.permute.xlu0 %328
        %v331 = vpack.c.bf16 %v280, %v280
        %v332 = vpack.c.bf16 %v323, %v323
        %v333 = vpack.c.bf16 %v326, %v326
        %v334 = vpack.c.bf16 %v329, %v329
        %336 = vrot.lane.b32.xlu0 %v317, 96
        %v337 = vpop.permute.xlu0 %336
        %vm338 = vcmask 64512
        %v340 = vsel %vm338, %v303, 0
        %v343 = vsel %vm338, %v337, 0
        %345 = vmatprep.subr.bf16.mxu0 0
        %346 = vmatpush1.bf16.xpose.msra.mxu0 %v343
        %347 = vmatprep.subr.bf16.mxu0 0
        %348 = vmatpush1.bf16.xpose.msra.mxu0 0
        %349 = vmatprep.subr.bf16.mxu0 0
        %350 = vmatpush1.bf16.xpose.msra.mxu0 0
        %351 = vmatprep.subr.bf16.mxu0 0
        %352 = vmatpush1.bf16.xpose.msra.mxu0 0
        %353 = vmatprep.subr.bf16.mxu0 0
        %354 = vmatpush1.bf16.xpose.msra.mxu0 0
        %355 = vmatprep.subr.bf16.mxu0 0
        %356 = vmatpush1.bf16.xpose.msra.mxu0 0
        %357 = vmatprep.subr.bf16.mxu0 0
        %358 = vmatpush1.bf16.xpose.msra.mxu0 0
        %359 = vmatprep.subr.bf16.mxu0 0
        %360 = vmatpush1.bf16.xpose.msra.mxu0 0
        %361 = vmatprep.subr.bf16.mxu0 0
        %362 = vmatpush1.bf16.xpose.msra.mxu0 0
        %363 = vmatprep.subr.bf16.mxu0 0
        %364 = vmatpush1.bf16.xpose.msra.mxu0 0
        %365 = vmatprep.subr.bf16.mxu0 0
        %366 = vmatpush1.bf16.xpose.msra.mxu0 0
        %367 = vmatprep.subr.bf16.mxu0 0
        %368 = vmatpush1.bf16.xpose.msra.mxu0 0
        %369 = vmatprep.subr.bf16.mxu0 0
        %370 = vmatpush1.bf16.xpose.msra.mxu0 0
        %371 = vmatprep.subr.bf16.mxu0 0
        %372 = vmatpush1.bf16.xpose.msra.mxu0 0
        %373 = vmatprep.subr.bf16.mxu0 0
        %374 = vmatpush1.bf16.xpose.msra.mxu0 0
        %375 = vmatprep.subr.bf16.mxu0 0
        %376 = vmatpush1.bf16.xpose.msra.mxu0 0
        %377 = vmatprep.mubr.bf16.mxu0 0
        %378 = vmatmul.mubr.bf16.gmra.mrb[0].mxu0 %v340
        %v379 = vpop.f32.mrb[0].mxu0
        %v380 = vadd.f32 0.0, %v379
        %v381 = vpop.f32.mrb[0].mxu0
        %v382 = vpop.f32.mrb[0].mxu0
        %v383 = vpop.f32.mrb[0].mxu0
        %384 = vdwg.mxu0
        %386 = vrot.lane.b32.xlu0 %v318, 96
        %v387 = vpop.permute.xlu0 %386
        %v389 = vsel %vm338, %v304, 0
        %v392 = vsel %vm338, %v387, 0
        %394 = vmatprep.subr.bf16.mxu0 0
        %395 = vmatpush1.bf16.xpose.msra.mxu0 %v392
        %396 = vmatprep.subr.bf16.mxu0 0
        %397 = vmatpush1.bf16.xpose.msra.mxu0 0
        %398 = vmatprep.subr.bf16.mxu0 0
        %399 = vmatpush1.bf16.xpose.msra.mxu0 0
        %400 = vmatprep.subr.bf16.mxu0 0
        %401 = vmatpush1.bf16.xpose.msra.mxu0 0
        %402 = vmatprep.subr.bf16.mxu0 0
        %403 = vmatpush1.bf16.xpose.msra.mxu0 0
        %404 = vmatprep.subr.bf16.mxu0 0
        %405 = vmatpush1.bf16.xpose.msra.mxu0 0
        %406 = vmatprep.subr.bf16.mxu0 0
        %407 = vmatpush1.bf16.xpose.msra.mxu0 0
        %408 = vmatprep.subr.bf16.mxu0 0
        %409 = vmatpush1.bf16.xpose.msra.mxu0 0
        %410 = vmatprep.subr.bf16.mxu0 0
        %411 = vmatpush1.bf16.xpose.msra.mxu0 0
        %412 = vmatprep.subr.bf16.mxu0 0
        %413 = vmatpush1.bf16.xpose.msra.mxu0 0
        %414 = vmatprep.subr.bf16.mxu0 0
        %415 = vmatpush1.bf16.xpose.msra.mxu0 0
        %416 = vmatprep.subr.bf16.mxu0 0
        %417 = vmatpush1.bf16.xpose.msra.mxu0 0
        %418 = vmatprep.subr.bf16.mxu0 0
        %419 = vmatpush1.bf16.xpose.msra.mxu0 0
        %420 = vmatprep.subr.bf16.mxu0 0
        %421 = vmatpush1.bf16.xpose.msra.mxu0 0
        %422 = vmatprep.subr.bf16.mxu0 0
        %423 = vmatpush1.bf16.xpose.msra.mxu0 0
        %424 = vmatprep.subr.bf16.mxu0 0
        %425 = vmatpush1.bf16.xpose.msra.mxu0 0
        %426 = vmatprep.mubr.bf16.mxu0 0
        %427 = vmatmul.mubr.bf16.gmra.mrb[0].mxu0 %v389
        %v428 = vpop.f32.mrb[0].mxu0
        %v429 = vadd.f32 0.0, %v428
        %v430 = vpop.f32.mrb[0].mxu0
        %v431 = vpop.f32.mrb[0].mxu0
        %v432 = vpop.f32.mrb[0].mxu0
        %433 = vdwg.mxu0
        %435 = vrot.lane.b32.xlu0 %v319, 96
        %v436 = vpop.permute.xlu0 %435
        %v438 = vsel %vm338, %v305, 0
        %v441 = vsel %vm338, %v436, 0
        %443 = vmatprep.subr.bf16.mxu0 0
        %444 = vmatpush1.bf16.xpose.msra.mxu0 %v441
        %445 = vmatprep.subr.bf16.mxu0 0
        %446 = vmatpush1.bf16.xpose.msra.mxu0 0
        %447 = vmatprep.subr.bf16.mxu0 0
        %448 = vmatpush1.bf16.xpose.msra.mxu0 0
        %449 = vmatprep.subr.bf16.mxu0 0
        %450 = vmatpush1.bf16.xpose.msra.mxu0 0
        %451 = vmatprep.subr.bf16.mxu0 0
        %452 = vmatpush1.bf16.xpose.msra.mxu0 0
        %453 = vmatprep.subr.bf16.mxu0 0
        %454 = vmatpush1.bf16.xpose.msra.mxu0 0
        %455 = vmatprep.subr.bf16.mxu0 0
        %456 = vmatpush1.bf16.xpose.msra.mxu0 0
        %457 = vmatprep.subr.bf16.mxu0 0
        %458 = vmatpush1.bf16.xpose.msra.mxu0 0
        %459 = vmatprep.subr.bf16.mxu0 0
        %460 = vmatpush1.bf16.xpose.msra.mxu0 0
        %461 = vmatprep.subr.bf16.mxu0 0
        %462 = vmatpush1.bf16.xpose.msra.mxu0 0
        %463 = vmatprep.subr.bf16.mxu0 0
        %464 = vmatpush1.bf16.xpose.msra.mxu0 0
        %465 = vmatprep.subr.bf16.mxu0 0
        %466 = vmatpush1.bf16.xpose.msra.mxu0 0
        %467 = vmatprep.subr.bf16.mxu0 0
        %468 = vmatpush1.bf16.xpose.msra.mxu0 0
        %469 = vmatprep.subr.bf16.mxu0 0
        %470 = vmatpush1.bf16.xpose.msra.mxu0 0
        %471 = vmatprep.subr.bf16.mxu0 0
        %472 = vmatpush1.bf16.xpose.msra.mxu0 0
        %473 = vmatprep.subr.bf16.mxu0 0
        %474 = vmatpush1.bf16.xpose.msra.mxu0 0
        %475 = vmatprep.mubr.bf16.mxu0 0
        %476 = vmatmul.mubr.bf16.gmra.mrb[0].mxu0 %v438
        %v477 = vpop.f32.mrb[0].mxu0
        %v478 = vadd.f32 0.0, %v477
        %v479 = vpop.f32.mrb[0].mxu0
        %v480 = vpop.f32.mrb[0].mxu0
        %v481 = vpop.f32.mrb[0].mxu0
        %482 = vdwg.mxu0
        %484 = vrot.lane.b32.xlu0 %v320, 96
        %v485 = vpop.permute.xlu0 %484
        %v487 = vsel %vm338, %v306, 0
        %v490 = vsel %vm338, %v485, 0
        %492 = vmatprep.subr.bf16.mxu0 0
        %493 = vmatpush1.bf16.xpose.msra.mxu0 %v490
        %494 = vmatprep.subr.bf16.mxu0 0
        %495 = vmatpush1.bf16.xpose.msra.mxu0 0
        %496 = vmatprep.subr.bf16.mxu0 0
        %497 = vmatpush1.bf16.xpose.msra.mxu0 0
        %498 = vmatprep.subr.bf16.mxu0 0
        %499 = vmatpush1.bf16.xpose.msra.mxu0 0
        %500 = vmatprep.subr.bf16.mxu0 0
        %501 = vmatpush1.bf16.xpose.msra.mxu0 0
        %502 = vmatprep.subr.bf16.mxu0 0
        %503 = vmatpush1.bf16.xpose.msra.mxu0 0
        %504 = vmatprep.subr.bf16.mxu0 0
        %505 = vmatpush1.bf16.xpose.msra.mxu0 0
        %506 = vmatprep.subr.bf16.mxu0 0
        %507 = vmatpush1.bf16.xpose.msra.mxu0 0
        %508 = vmatprep.subr.bf16.mxu0 0
        %509 = vmatpush1.bf16.xpose.msra.mxu0 0
        %510 = vmatprep.subr.bf16.mxu0 0
        %511 = vmatpush1.bf16.xpose.msra.mxu0 0
        %512 = vmatprep.subr.bf16.mxu0 0
        %513 = vmatpush1.bf16.xpose.msra.mxu0 0
        %514 = vmatprep.subr.bf16.mxu0 0
        %515 = vmatpush1.bf16.xpose.msra.mxu0 0
        %516 = vmatprep.subr.bf16.mxu0 0
        %517 = vmatpush1.bf16.xpose.msra.mxu0 0
        %518 = vmatprep.subr.bf16.mxu0 0
        %519 = vmatpush1.bf16.xpose.msra.mxu0 0
        %520 = vmatprep.subr.bf16.mxu0 0
        %521 = vmatpush1.bf16.xpose.msra.mxu0 0
        %522 = vmatprep.subr.bf16.mxu0 0
        %523 = vmatpush1.bf16.xpose.msra.mxu0 0
        %524 = vmatprep.mubr.bf16.mxu0 0
        %525 = vmatmul.mubr.bf16.gmra.mrb[0].mxu0 %v487
        %v526 = vpop.f32.mrb[0].mxu0
        %v527 = vadd.f32 0.0, %v526
        %v528 = vpop.f32.mrb[0].mxu0
        %v529 = vpop.f32.mrb[0].mxu0
        %v530 = vpop.f32.mrb[0].mxu0
        %531 = vdwg.mxu0
        %v532 = vmul.f32 %v380, 0.35355338
        %v533 = vmul.f32 %v429, 0.35355338
        %v534 = vmul.f32 %v478, 0.35355338
        %v535 = vmul.f32 %v527, 0.35355338
        %v536 = vsel %vm338, %v532, -inf
        %537 = vmax.xlane.f32.xlu0 %v536
        %v538 = vpop.xlane.xlu0 %537
        %v539 = vsel %vm338, %v533, -inf
        %540 = vmax.xlane.f32.xlu0 %v539
        %v541 = vpop.xlane.xlu0 %540
        %v542 = vsel %vm338, %v534, -inf
        %543 = vmax.xlane.f32.xlu0 %v542
        %v544 = vpop.xlane.xlu0 %543
        %v545 = vsel %vm338, %v535, -inf
        %546 = vmax.xlane.f32.xlu0 %v545
        %v547 = vpop.xlane.xlu0 %546
        %v548 = vsub.f32 %v532, %v538
        %v549 = vsub.f32 %v533, %v541
        %v550 = vsub.f32 %v534, %v544
        %v551 = vsub.f32 %v535, %v547
        %v552 = vmul.f32 %v548, 1.442695
        %v553 = vpow.pop %v552
        %v554 = vmul.f32 %v549, 1.442695
        %v555 = vpow.pop %v554
        %v556 = vmul.f32 %v550, 1.442695
        %v557 = vpow.pop %v556
        %v558 = vmul.f32 %v551, 1.442695
        %v559 = vpow.pop %v558
        %v560 = vsel %vm338, %v553, 0.0
        %561 = vadd.xlane.f32.xlu0 %v560
        %v562 = vpop.xlane.xlu0 %561
        %v563 = vsel %vm338, %v555, 0.0
        %564 = vadd.xlane.f32.xlu0 %v563
        %v565 = vpop.xlane.xlu0 %564
        %v566 = vsel %vm338, %v557, 0.0
        %567 = vadd.xlane.f32.xlu0 %v566
        %v568 = vpop.xlane.xlu0 %567
        %v569 = vsel %vm338, %v559, 0.0
        %570 = vadd.xlane.f32.xlu0 %v569
        %v571 = vpop.xlane.xlu0 %570
        %v572 = vrcp.pop %v562
        %v573 = vmul.f32 %v553, %v572
        %v574 = vrcp.pop %v565
        %v575 = vmul.f32 %v555, %v574
        %v576 = vrcp.pop %v568
        %v577 = vmul.f32 %v557, %v576
        %v578 = vrcp.pop %v571
        %v579 = vmul.f32 %v559, %v578
        %v580 = vpack.c.bf16 %v573, %v573
        %v581 = vpack.c.bf16 %v575, %v575
        %v582 = vpack.c.bf16 %v577, %v577
        %v583 = vpack.c.bf16 %v579, %v579
        %585 = vrot.lane.b32.xlu0 %v331, 64
        %v586 = vpop.permute.xlu0 %585
        %v588 = vsel %vm338, %v580, 0
        %vm590 = vcmask 1043456
        %v592 = vsel %vm590, %v586, 0
        %594 = vmatprep.subr.bf16.mxu0 0
        %595 = vmatpush1.bf16.msra.mxu0 %v592
        %596 = vmatprep.subr.bf16.mxu0 0
        %597 = vmatpush1.bf16.msra.mxu0 0
        %598 = vmatprep.subr.bf16.mxu0 0
        %599 = vmatpush1.bf16.msra.mxu0 0
        %600 = vmatprep.subr.bf16.mxu0 0
        %601 = vmatpush1.bf16.msra.mxu0 0
        %602 = vmatprep.subr.bf16.mxu0 0
        %603 = vmatpush1.bf16.msra.mxu0 0
        %604 = vmatprep.subr.bf16.mxu0 0
        %605 = vmatpush1.bf16.msra.mxu0 0
        %606 = vmatprep.subr.bf16.mxu0 0
        %607 = vmatpush1.bf16.msra.mxu0 0
        %608 = vmatprep.subr.bf16.mxu0 0
        %609 = vmatpush1.bf16.msra.mxu0 0
        %610 = vmatprep.subr.bf16.mxu0 0
        %611 = vmatpush1.bf16.msra.mxu0 0
        %612 = vmatprep.subr.bf16.mxu0 0
        %613 = vmatpush1.bf16.msra.mxu0 0
        %614 = vmatprep.subr.bf16.mxu0 0
        %615 = vmatpush1.bf16.msra.mxu0 0
        %616 = vmatprep.subr.bf16.mxu0 0
        %617 = vmatpush1.bf16.msra.mxu0 0
        %618 = vmatprep.subr.bf16.mxu0 0
        %619 = vmatpush1.bf16.msra.mxu0 0
        %620 = vmatprep.subr.bf16.mxu0 0
        %621 = vmatpush1.bf16.msra.mxu0 0
        %622 = vmatprep.subr.bf16.mxu0 0
        %623 = vmatpush1.bf16.msra.mxu0 0
        %624 = vmatprep.subr.bf16.mxu0 0
        %625 = vmatpush1.bf16.msra.mxu0 0
        %626 = vmatprep.mubr.bf16.mxu0 0
        %627 = vmatmul.mubr.bf16.gmra.mrb[0].mxu0 %v588
        %v628 = vpop.f32.mrb[0].mxu0
        %v629 = vadd.f32 0.0, %v628
        %v630 = vpop.f32.mrb[0].mxu0
        %v631 = vpop.f32.mrb[0].mxu0
        %v632 = vpop.f32.mrb[0].mxu0
        %633 = vdwg.mxu0
        %635 = vrot.lane.b32.xlu0 %v332, 64
        %v636 = vpop.permute.xlu0 %635
        %v638 = vsel %vm338, %v581, 0
        %v641 = vsel %vm590, %v636, 0
        %643 = vmatprep.subr.bf16.mxu0 0
        %644 = vmatpush1.bf16.msra.mxu0 %v641
        %645 = vmatprep.subr.bf16.mxu0 0
        %646 = vmatpush1.bf16.msra.mxu0 0
        %647 = vmatprep.subr.bf16.mxu0 0
        %648 = vmatpush1.bf16.msra.mxu0 0
        %649 = vmatprep.subr.bf16.mxu0 0
        %650 = vmatpush1.bf16.msra.mxu0 0
        %651 = vmatprep.subr.bf16.mxu0 0
        %652 = vmatpush1.bf16.msra.mxu0 0
        %653 = vmatprep.subr.bf16.mxu0 0
        %654 = vmatpush1.bf16.msra.mxu0 0
        %655 = vmatprep.subr.bf16.mxu0 0
        %656 = vmatpush1.bf16.msra.mxu0 0
        %657 = vmatprep.subr.bf16.mxu0 0
        %658 = vmatpush1.bf16.msra.mxu0 0
        %659 = vmatprep.subr.bf16.mxu0 0
        %660 = vmatpush1.bf16.msra.mxu0 0
        %661 = vmatprep.subr.bf16.mxu0 0
        %662 = vmatpush1.bf16.msra.mxu0 0
        %663 = vmatprep.subr.bf16.mxu0 0
        %664 = vmatpush1.bf16.msra.mxu0 0
        %665 = vmatprep.subr.bf16.mxu0 0
        %666 = vmatpush1.bf16.msra.mxu0 0
        %667 = vmatprep.subr.bf16.mxu0 0
        %668 = vmatpush1.bf16.msra.mxu0 0
        %669 = vmatprep.subr.bf16.mxu0 0
        %670 = vmatpush1.bf16.msra.mxu0 0
        %671 = vmatprep.subr.bf16.mxu0 0
        %672 = vmatpush1.bf16.msra.mxu0 0
        %673 = vmatprep.subr.bf16.mxu0 0
        %674 = vmatpush1.bf16.msra.mxu0 0
        %675 = vmatprep.mubr.bf16.mxu0 0
        %676 = vmatmul.mubr.bf16.gmra.mrb[0].mxu0 %v638
        %v677 = vpop.f32.mrb[0].mxu0
        %v678 = vadd.f32 0.0, %v677
        %v679 = vpop.f32.mrb[0].mxu0
        %v680 = vpop.f32.mrb[0].mxu0
        %v681 = vpop.f32.mrb[0].mxu0
        %682 = vdwg.mxu0
        %684 = vrot.lane.b32.xlu0 %v333, 64
        %v685 = vpop.permute.xlu0 %684
        %v687 = vsel %vm338, %v582, 0
        %v690 = vsel %vm590, %v685, 0
        %692 = vmatprep.subr.bf16.mxu0 0
        %693 = vmatpush1.bf16.msra.mxu0 %v690
        %694 = vmatprep.subr.bf16.mxu0 0
        %695 = vmatpush1.bf16.msra.mxu0 0
        %696 = vmatprep.subr.bf16.mxu0 0
        %697 = vmatpush1.bf16.msra.mxu0 0
        %698 = vmatprep.subr.bf16.mxu0 0
        %699 = vmatpush1.bf16.msra.mxu0 0
        %700 = vmatprep.subr.bf16.mxu0 0
        %701 = vmatpush1.bf16.msra.mxu0 0
        %702 = vmatprep.subr.bf16.mxu0 0
        %703 = vmatpush1.bf16.msra.mxu0 0
        %704 = vmatprep.subr.bf16.mxu0 0
        %705 = vmatpush1.bf16.msra.mxu0 0
        %706 = vmatprep.subr.bf16.mxu0 0
        %707 = vmatpush1.bf16.msra.mxu0 0
        %708 = vmatprep.subr.bf16.mxu0 0
        %709 = vmatpush1.bf16.msra.mxu0 0
        %710 = vmatprep.subr.bf16.mxu0 0
        %711 = vmatpush1.bf16.msra.mxu0 0
        %712 = vmatprep.subr.bf16.mxu0 0
        %713 = vmatpush1.bf16.msra.mxu0 0
        %714 = vmatprep.subr.bf16.mxu0 0
        %715 = vmatpush1.bf16.msra.mxu0 0
        %716 = vmatprep.subr.bf16.mxu0 0
        %717 = vmatpush1.bf16.msra.mxu0 0
        %718 = vmatprep.subr.bf16.mxu0 0
        %719 = vmatpush1.bf16.msra.mxu0 0
        %720 = vmatprep.subr.bf16.mxu0 0
        %721 = vmatpush1.bf16.msra.mxu0 0
        %722 = vmatprep.subr.bf16.mxu0 0
        %723 = vmatpush1.bf16.msra.mxu0 0
        %724 = vmatprep.mubr.bf16.mxu0 0
        %725 = vmatmul.mubr.bf16.gmra.mrb[0].mxu0 %v687
        %v726 = vpop.f32.mrb[0].mxu0
        %v727 = vadd.f32 0.0, %v726
        %v728 = vpop.f32.mrb[0].mxu0
        %v729 = vpop.f32.mrb[0].mxu0
        %v730 = vpop.f32.mrb[0].mxu0
        %731 = vdwg.mxu0
        %733 = vrot.lane.b32.xlu0 %v334, 64
        %v734 = vpop.permute.xlu0 %733
        %v736 = vsel %vm338, %v583, 0
        %v739 = vsel %vm590, %v734, 0
        %741 = vmatprep.subr.bf16.mxu0 0
        %742 = vmatpush1.bf16.msra.mxu0 %v739
        %743 = vmatprep.subr.bf16.mxu0 0
        %744 = vmatpush1.bf16.msra.mxu0 0
        %745 = vmatprep.subr.bf16.mxu0 0
        %746 = vmatpush1.bf16.msra.mxu0 0
        %747 = vmatprep.subr.bf16.mxu0 0
        %748 = vmatpush1.bf16.msra.mxu0 0
        %749 = vmatprep.subr.bf16.mxu0 0
        %750 = vmatpush1.bf16.msra.mxu0 0
        %751 = vmatprep.subr.bf16.mxu0 0
        %752 = vmatpush1.bf16.msra.mxu0 0
        %753 = vmatprep.subr.bf16.mxu0 0
        %754 = vmatpush1.bf16.msra.mxu0 0
        %755 = vmatprep.subr.bf16.mxu0 0
        %756 = vmatpush1.bf16.msra.mxu0 0
        %757 = vmatprep.subr.bf16.mxu0 0
        %758 = vmatpush1.bf16.msra.mxu0 0
        %759 = vmatprep.subr.bf16.mxu0 0
        %760 = vmatpush1.bf16.msra.mxu0 0
        %761 = vmatprep.subr.bf16.mxu0 0
        %762 = vmatpush1.bf16.msra.mxu0 0
        %763 = vmatprep.subr.bf16.mxu0 0
        %764 = vmatpush1.bf16.msra.mxu0 0
        %765 = vmatprep.subr.bf16.mxu0 0
        %766 = vmatpush1.bf16.msra.mxu0 0
        %767 = vmatprep.subr.bf16.mxu0 0
        %768 = vmatpush1.bf16.msra.mxu0 0
        %769 = vmatprep.subr.bf16.mxu0 0
        %770 = vmatpush1.bf16.msra.mxu0 0
        %771 = vmatprep.subr.bf16.mxu0 0
        %772 = vmatpush1.bf16.msra.mxu0 0
        %773 = vmatprep.mubr.bf16.mxu0 0
        %774 = vmatmul.mubr.bf16.gmra.mrb[0].mxu0 %v736
        %v775 = vpop.f32.mrb[0].mxu0
        %v776 = vadd.f32 0.0, %v775
        %v777 = vpop.f32.mrb[0].mxu0
        %v778 = vpop.f32.mrb[0].mxu0
        %v779 = vpop.f32.mrb[0].mxu0
        %780 = vdwg.mxu0
        %782 = vrot.lane.b32.xlu0 %v678, 8
        %v783 = vpop.permute.xlu0 %782
        %786 = vrot.lane.b32.xlu0 %v727, 16
        %v787 = vpop.permute.xlu0 %786
        %790 = vrot.lane.b32.xlu0 %v776, 24
        %v791 = vpop.permute.xlu0 %790
        %v793 = vsel %vm338, %v629, %v783
        %vm794 = vcmask 130048
        %v795 = vsel %vm794, %v793, %v787
        %vm796 = vcmask 195584
        %v797 = vsel %vm796, %v795, %v791
        %v798 = vpack.c.bf16 %v797, %v797
        %v799 = vlaneseq
        %v800 = vshrl.u32 %v799, 7
        %v801 = vsub.s32 3, %v800
        %v802 = vrot.slane %v199, %v801
        %v807 = vunpack.c.l.b16 %v281
        %v808 = vunpack.c.l.b16 %v282
        %v809 = vunpack.c.l.b16 %v283
        %v810 = vunpack.c.l.b16 %v284
        %v811 = vpack.c.b16 %v808, %v807
        %v812 = vpack.c.b16 %v810, %v809
        %v816 = vsel %vm214, %v798, 0
        %818 = vmatprep.subr.bf16.mxu0 0
        %819 = vmatpush1.bf16.msra.mxu0 %v811
        %820 = vmatprep.subr.bf16.mxu0 0
        %821 = vmatpush1.bf16.msra.mxu0 %v812
        %822 = vmatprep.subr.bf16.mxu0 0
        %823 = vmatpush1.bf16.msra.mxu0 0
        %824 = vmatprep.subr.bf16.mxu0 0
        %825 = vmatpush1.bf16.msra.mxu0 0
        %826 = vmatprep.subr.bf16.mxu0 0
        %827 = vmatpush1.bf16.msra.mxu0 0
        %828 = vmatprep.subr.bf16.mxu0 0
        %829 = vmatpush1.bf16.msra.mxu0 0
        %830 = vmatprep.subr.bf16.mxu0 0
        %831 = vmatpush1.bf16.msra.mxu0 0
        %832 = vmatprep.subr.bf16.mxu0 0
        %833 = vmatpush1.bf16.msra.mxu0 0
        %834 = vmatprep.subr.bf16.mxu0 0
        %835 = vmatpush1.bf16.msra.mxu0 0
        %836 = vmatprep.subr.bf16.mxu0 0
        %837 = vmatpush1.bf16.msra.mxu0 0
        %838 = vmatprep.subr.bf16.mxu0 0
        %839 = vmatpush1.bf16.msra.mxu0 0
        %840 = vmatprep.subr.bf16.mxu0 0
        %841 = vmatpush1.bf16.msra.mxu0 0
        %842 = vmatprep.subr.bf16.mxu0 0
        %843 = vmatpush1.bf16.msra.mxu0 0
        %844 = vmatprep.subr.bf16.mxu0 0
        %845 = vmatpush1.bf16.msra.mxu0 0
        %846 = vmatprep.subr.bf16.mxu0 0
        %847 = vmatpush1.bf16.msra.mxu0 0
        %848 = vmatprep.subr.bf16.mxu0 0
        %849 = vmatpush1.bf16.msra.mxu0 0
        %850 = vmatprep.mubr.bf16.mxu0 0
        %851 = vmatmul.mubr.bf16.gmra.mrb[0].mxu0 %v816
        %v852 = vpop.f32.mrb[0].mxu0
        %v853 = vadd.f32 %v802, %v852
        %v854 = vpop.f32.mrb[0].mxu0
        %v855 = vpop.f32.mrb[0].mxu0
        %v856 = vpop.f32.mrb[0].mxu0
        %857 = vdwg.mxu0
        %v858 = vadd.f32 %v194, %v853
        %v859 = vsel %vm214, %v858, 0.0
        %860 = vadd.xlane.f32.xlu0 %v859
        %v861 = vpop.xlane.xlu0 %860
        %v862 = vrcp.pop 32.0
        %v863 = vmul.f32 %v861, %v862
        %v864 = vsub.f32 %v858, %v863
        %v865 = vmul.f32 %v864, %v864
        %v866 = vsel %vm214, %v865, 0.0
        %867 = vadd.xlane.f32.xlu0 %v866
        %v868 = vpop.xlane.xlu0 %867
        %v869 = vmul.f32 %v868, %v862
        %v870 = vadd.f32 %v869, 1e-05
        %v871 = vrsqrt.pop %v870
        %v872 = vmul.f32 %v864, %v871
        %v873 = vlaneseq
        %v874 = vshrl.u32 %v873, 7
        %v875 = vsub.s32 6, %v874
        %v876 = vrot.slane %v199, %v875
        %v877 = vmul.f32 %v872, %v876
        %v878 = vlaneseq
        %v879 = vshrl.u32 %v878, 7
        %v880 = vsub.s32 7, %v879
        %v881 = vrot.slane %v199, %v880
        %v882 = vadd.f32 %v877, %v881
        %v883 = vadd.f32 %v194, %v882
        %v884 = vsel %vm214, %v883, 0.0
        %885 = vadd.xlane.f32.xlu0 %v884
        %v886 = vpop.xlane.xlu0 %885
        %v887 = vmul.f32 %v886, %v862
        %v888 = vsub.f32 %v883, %v887
        %v889 = vmul.f32 %v888, %v888
        %v890 = vsel %vm214, %v889, 0.0
        %891 = vadd.xlane.f32.xlu0 %v890
        %v892 = vpop.xlane.xlu0 %891
        %v893 = vmul.f32 %v892, %v862
        %v894 = vadd.f32 %v893, 1e-05
        %v895 = vrsqrt.pop %v894
        %v896 = vmul.f32 %v888, %v895
        %v897 = vlaneseq
        %v898 = vshrl.u32 %v897, 7
        %v899 = vsub.s32 0, %v898
        %v900 = vrot.slane %v200, %v899
        %v901 = vmul.f32 %v896, %v900
        %v902 = vlaneseq
        %v903 = vshrl.u32 %v902, 7
        %v904 = vsub.s32 1, %v903
        %v905 = vrot.slane %v200, %v904
        %v906 = vadd.f32 %v901, %v905
        %v907 = vpack.c.bf16 %v906, %v906
        %v908 = vlaneseq
        %v909 = vshrl.u32 %v908, 7
        %v910 = vsub.s32 4, %v909
        %v911 = vrot.slane %v199, %v910
        %v912 = vunpack.c.h.b16 %v195
        %v913 = vunpack.c.h.b16 %v196
        %v914 = vunpack.c.h.b16 %v197
        %v915 = vunpack.c.h.b16 %v198
        %v916 = vpack.c.b16 %v913, %v912
        %v917 = vpack.c.b16 %v915, %v914
        %v921 = vsel %vm214, %v907, 0
        %923 = vmatprep.subr.bf16.mxu0 0
        %924 = vmatpush1.bf16.msra.mxu0 %v916
        %925 = vmatprep.subr.bf16.mxu0 0
        %926 = vmatpush1.bf16.msra.mxu0 %v917
        %927 = vmatprep.subr.bf16.mxu0 0
        %928 = vmatpush1.bf16.msra.mxu0 0
        %929 = vmatprep.subr.bf16.mxu0 0
        %930 = vmatpush1.bf16.msra.mxu0 0
        %931 = vmatprep.subr.bf16.mxu0 0
        %932 = vmatpush1.bf16.msra.mxu0 0
        %933 = vmatprep.subr.bf16.mxu0 0
        %934 = vmatpush1.bf16.msra.mxu0 0
        %935 = vmatprep.subr.bf16.mxu0 0
        %936 = vmatpush1.bf16.msra.mxu0 0
        %937 = vmatprep.subr.bf16.mxu0 0
        %938 = vmatpush1.bf16.msra.mxu0 0
        %939 = vmatprep.subr.bf16.mxu0 0
        %940 = vmatpush1.bf16.msra.mxu0 0
        %941 = vmatprep.subr.bf16.mxu0 0
        %942 = vmatpush1.bf16.msra.mxu0 0
        %943 = vmatprep.subr.bf16.mxu0 0
        %944 = vmatpush1.bf16.msra.mxu0 0
        %945 = vmatprep.subr.bf16.mxu0 0
        %946 = vmatpush1.bf16.msra.mxu0 0
        %947 = vmatprep.subr.bf16.mxu0 0
        %948 = vmatpush1.bf16.msra.mxu0 0
        %949 = vmatprep.subr.bf16.mxu0 0
        %950 = vmatpush1.bf16.msra.mxu0 0
        %951 = vmatprep.subr.bf16.mxu0 0
        %952 = vmatpush1.bf16.msra.mxu0 0
        %953 = vmatprep.subr.bf16.mxu0 0
        %954 = vmatpush1.bf16.msra.mxu0 0
        %955 = vmatprep.mubr.bf16.mxu0 0
        %956 = vmatmul.mubr.bf16.gmra.mrb[0].mxu0 %v921
        %v957 = vpop.f32.mrb[0].mxu0
        %v958 = vadd.f32 %v911, %v957
        %v959 = vpop.f32.mrb[0].mxu0
        %v960 = vpop.f32.mrb[0].mxu0
        %v961 = vpop.f32.mrb[0].mxu0
        %962 = vdwg.mxu0
        %v963 = vmax.f32 %v958, 0.0
        %v964 = vpack.c.bf16 %v963, %v963
        %v965 = vlaneseq
        %v966 = vshrl.u32 %v965, 7
        %v967 = vsub.s32 5, %v966
        %v968 = vrot.slane %v199, %v967
        %v977 = vunpack.c.l.b16 %v285
        %v978 = vunpack.c.l.b16 %v286
        %v979 = vunpack.c.l.b16 %v287
        %v980 = vunpack.c.l.b16 %v288
        %v981 = vunpack.c.l.b16 %v289
        %v982 = vunpack.c.l.b16 %v290
        %v983 = vunpack.c.l.b16 %v291
        %v984 = vunpack.c.l.b16 %v292
        %v985 = vpack.c.b16 %v978, %v977
        %v986 = vpack.c.b16 %v980, %v979
        %v987 = vpack.c.b16 %v982, %v981
        %v988 = vpack.c.b16 %v984, %v983
        %vm993 = vcmask 523264
        %v995 = vsel %vm993, %v964, 0
        %997 = vmatprep.subr.bf16.mxu0 0
        %998 = vmatpush1.bf16.msra.mxu0 %v985
        %999 = vmatprep.subr.bf16.mxu0 0
        %1000 = vmatpush1.bf16.msra.mxu0 %v986
        %1001 = vmatprep.subr.bf16.mxu0 0
        %1002 = vmatpush1.bf16.msra.mxu0 %v987
        %1003 = vmatprep.subr.bf16.mxu0 0
        %1004 = vmatpush1.bf16.msra.mxu0 %v988
        %1005 = vmatprep.subr.bf16.mxu0 0
        %1006 = vmatpush1.bf16.msra.mxu0 0
        %1007 = vmatprep.subr.bf16.mxu0 0
        %1008 = vmatpush1.bf16.msra.mxu0 0
        %1009 = vmatprep.subr.bf16.mxu0 0
        %1010 = vmatpush1.bf16.msra.mxu0 0
        %1011 = vmatprep.subr.bf16.mxu0 0
        %1012 = vmatpush1.bf16.msra.mxu0 0
        %1013 = vmatprep.subr.bf16.mxu0 0
        %1014 = vmatpush1.bf16.msra.mxu0 0
        %1015 = vmatprep.subr.bf16.mxu0 0
        %1016 = vmatpush1.bf16.msra.mxu0 0
        %1017 = vmatprep.subr.bf16.mxu0 0
        %1018 = vmatpush1.bf16.msra.mxu0 0
        %1019 = vmatprep.subr.bf16.mxu0 0
        %1020 = vmatpush1.bf16.msra.mxu0 0
        %1021 = vmatprep.subr.bf16.mxu0 0
        %1022 = vmatpush1.bf16.msra.mxu0 0
        %1023 = vmatprep.subr.bf16.mxu0 0
        %1024 = vmatpush1.bf16.msra.mxu0 0
        %1025 = vmatprep.subr.bf16.mxu0 0
        %1026 = vmatpush1.bf16.msra.mxu0 0
        %1027 = vmatprep.subr.bf16.mxu0 0
        %1028 = vmatpush1.bf16.msra.mxu0 0
        %1029 = vmatprep.mubr.bf16.mxu0 0
        %1030 = vmatmul.mubr.bf16.gmra.mrb[0].mxu0 %v995
        %v1031 = vpop.f32.mrb[0].mxu0
        %v1032 = vadd.f32 %v968, %v1031
        %v1033 = vpop.f32.mrb[0].mxu0
        %v1034 = vpop.f32.mrb[0].mxu0
        %v1035 = vpop.f32.mrb[0].mxu0
        %1036 = vdwg.mxu0
        %v1037 = vadd.f32 %v906, %v1032
        %v1038 = vsel %vm214, %v1037, 0.0
        %1039 = vadd.xlane.f32.xlu0 %v1038
        %v1040 = vpop.xlane.xlu0 %1039
        %v1041 = vmul.f32 %v1040, %v862
        %v1042 = vsub.f32 %v1037, %v1041
        %v1043 = vmul.f32 %v1042, %v1042
        %v1044 = vsel %vm214, %v1043, 0.0
        %1045 = vadd.xlane.f32.xlu0 %v1044
        %v1046 = vpop.xlane.xlu0 %1045
        %v1047 = vmul.f32 %v1046, %v862
        %v1048 = vadd.f32 %v1047, 1e-05
        %v1049 = vrsqrt.pop %v1048
        %v1050 = vmul.f32 %v1042, %v1049
        %v1051 = vlaneseq
        %v1052 = vshrl.u32 %v1051, 7
        %v1053 = vsub.s32 2, %v1052
        %v1054 = vrot.slane %v200, %v1053
        %v1055 = vmul.f32 %v1050, %v1054
        %v1056 = vlaneseq
        %v1057 = vshrl.u32 %v1056, 7
        %v1058 = vsub.s32 3, %v1057
        %v1059 = vrot.slane %v200, %v1058
        %v1060 = vadd.f32 %v1055, %v1059
        %v1062 = vrot.slane %v1060, 1
        %1063 = vrot.lane.b32.xlu0 %v1062, 32
        %v1064 = vpop.permute.xlu0 %1063
        %v1066 = vrot.slane %v1060, 2
        %1067 = vrot.lane.b32.xlu0 %v1066, 64
        %v1068 = vpop.permute.xlu0 %1067
        %v1070 = vrot.slane %v1060, 3
        %1071 = vrot.lane.b32.xlu0 %v1070, 96
        %v1072 = vpop.permute.xlu0 %1071
        %v1074 = vrot.slane %v1060, 4
        %v1076 = vrot.slane %v1060, 5
        %1077 = vrot.lane.b32.xlu0 %v1076, 32
        %v1078 = vpop.permute.xlu0 %1077
        %v1080 = vrot.slane %v1060, 6
        %1081 = vrot.lane.b32.xlu0 %v1080, 64
        %v1082 = vpop.permute.xlu0 %1081
        %v1084 = vrot.slane %v1060, 7
        %1085 = vrot.lane.b32.xlu0 %v1084, 96
        %v1086 = vpop.permute.xlu0 %1085
        %v1088 = vsel %vm214, %v1060, %v1064
        %v1089 = vsel %vm993, %v1088, %v1068
        %vm1090 = vcmask 785408
        %v1091 = vsel %vm1090, %v1089, %v1072
        %v1092 = vsel %vm214, %v1074, %v1078
        %v1093 = vsel %vm993, %v1092, %v1082
        %v1094 = vsel %vm1090, %v1093, %v1086
        %v1097 = vcombine.low %v1091, %v1094
        %v1099 = vunpack.c.l.s4 1966171168
        %v1100 = vunpack.c.0.s8 %v1099
        %v1101 = vlaneseq
        %v1102 = vshrl.u32 %v1101, 7
        %v1103 = vsub.s32 %v1100, %v1102
        %v1104 = vrot.slane %v1097, %v1103
        %v1106 = vunpack.c.l.s4 1966171168
        %v1107 = vunpack.c.0.s8 %v1106
        %v1108 = vlaneseq
        %v1109 = vshrl.u32 %v1108, 7
        %v1110 = vsub.s32 %v1107, %v1109
        %v1111 = vrot.slane %v1104, %v1110
        %v1113 = vlaneseq
        %vm1114 = vcmp.ge.s32.totalorder %v1113, 0
        %vm1115 = vcmp.lt.s32.totalorder %v1113, 256
        %vm1116 = vmand %vm1114, %vm1115
        %1117 = vst.msk [vmem:[%s188] sm:$0x3] %vm1116, %v1111
        %s1118 = sand.u32 %s115, 1
        %s1119 = scalar_lea.sflag [#allocation3], %s1118
        %s1120 = sand.u32 %s115, 1
        %s1121 = smul.addr %s1120, 2
        %s1122 = scalar_lea.vmem [#allocation2], %s1121
        // Predicated region
        $region37: #{tpu_custom_call.1} parent=35 // pred_check
          %p1123 = pneg %p125
        $region38: #{tpu_custom_call.1} parent=35 // pred_check_branch
          %1125 = sbr.rel (%p1123) target = $region40
        $region39: #{tpu_custom_call.1} parent=35 // pred_region
          %s1127 = ssub.s32 32, 32
          %1128 = vsyncadd %s1119, %s1127
          %s1129 = smul.addr %s18, 2
          %s1130 = smul.addr %s1129, 16
          %s1131 = scalar_lea.hbm %s4, %s1130
          %s1133 = sshll.u32 %s1122, 4
          %s1134 = int_to_ptr.vmem [resolvable:$true] %s1133
          %1136 = dma.vmem_to_hbm [thread:$0]  %s1134, 32, %s1131, %s1119
        $region40: #{tpu_custom_call.1} parent=35 // pred_fallthru
          _
      $region36: #{tpu_custom_call.1} parent=5 // pred_fallthru
        _
      %p1137 = scmp.le.s32.totalorder 2, %s13
      // Predicated region
      $region41: #{tpu_custom_call.1} parent=5 // pred_check
        %p1138 = pneg %p1137
      $region42: #{tpu_custom_call.1} parent=5 // pred_check_branch
        %1140 = sbr.rel (%p1138) target = $region44
      $region43: #{tpu_custom_call.1} parent=5 // pred_region
        %s1141 = ssub.s32 %s13, 2
        // Predicated region
        $region45: #{tpu_custom_call.1} parent=43 // pred_check
          %p1142 = pneg %p131
        $region46: #{tpu_custom_call.1} parent=43 // pred_check_branch
          %1144 = sbr.rel (%p1142) target = $region48
        $region47: #{tpu_custom_call.1} parent=43 // pred_region
          %s1145 = sand.u32 %s116, 1
          %s1146 = scalar_lea.sflag [#allocation3], %s1145
          %s1147 = sand.u32 %s116, 1
          %s1148 = smul.addr %s1147, 2
          %s1149 = scalar_lea.vmem [#allocation2], %s1148
          %1150 = dma.done %s1146, 32
        $region48: #{tpu_custom_call.1} parent=43 // pred_fallthru
          _
      $region44: #{tpu_custom_call.1} parent=5 // pred_fallthru
        _
    $region6: #{tpu_custom_call.1} parent=1 // loop_footer
      %s17 = sadd.s32 1, %s13
    $region7: #{tpu_custom_call.1} parent=1 // loop_footer_branch
      %12 = sbr.rel target = $region3
    $region8: #{tpu_custom_call.1} parent=1 // loop_exit
      _
    %1151 = vsyncpa [#allocation3], 1
    %s1152 = scalar_lea.sflag [#allocation3], 1
    %1153 = vsyncpa %s1152, 1

</llo_original>
